<compile_context>
chip_gen: v5e
topology: v5e:2x2
jax: 0.10.0
libtpu: 0.0.40
codegen_flags: <defaults>
</compile_context>

<pallas_src>
import functools

import jax
import jax.numpy as jnp
from jax.experimental import pallas as pl
from jax.experimental.pallas import tpu as pltpu

EPS = 1e-5           # nn.BatchNorm1d default eps
ROW_TILE_MAX = 512   # rows per grid step (row-tiled kernels and scatter chunks)


# ---------------------------------------------------------------------------
# small helpers
# ---------------------------------------------------------------------------
def _round_up(x, m):
    return ((x + m - 1) // m) * m


def _row_tile(rows):
    # multiple of 8 (sublane rule); cap so tiles pipeline and fit VMEM.
    return min(ROW_TILE_MAX, _round_up(rows, 8))


@functools.lru_cache(maxsize=1)
def _vmem_limit_bytes():
    # Budget ~half the physical VMEM (re-derived for v7x's 64 MiB per core).
    try:
        cap = int(pltpu.get_tpu_info().vmem_capacity_bytes)
        return int(min(64 * 1024 * 1024, max(16 * 1024 * 1024, cap // 2)))
    except Exception:
        return 32 * 1024 * 1024


def _bdot(x, w):
    # MXU matmul: bf16 inputs, f32 accumulation.
    return jnp.dot(x.astype(jnp.bfloat16), w.astype(jnp.bfloat16),
                   preferred_element_type=jnp.float32)


def _affine_elu(y, scale, shift, res=None):
    # folded-BN affine (+ optional residual) + ELU(alpha=1), all in f32.
    y = y * scale + shift
    if res is not None:
        y = y + res
    # (expm1 would be marginally more accurate near 0; exp-1 kept for
    #  guaranteed Mosaic lowering — far below validation tolerance either way)
    return jnp.where(y > 0, y, jnp.exp(jnp.minimum(y, 0.0)) - 1.0)


# ---------------------------------------------------------------------------
# Pallas kernels
# ---------------------------------------------------------------------------
def _down_node_kernel(x_ref, w_ref, s_ref, b_ref, o_ref):
    # projectDown_node -> bn1_node -> ELU
    y = _bdot(x_ref[...], w_ref[...])
    o_ref[...] = _affine_elu(y, s_ref[...], b_ref[...]).astype(o_ref.dtype)


def _edge_fused_kernel(e_ref, src_ref, dst_ref,
                       wde_ref, sde_ref, bde_ref,
                       wes_ref, wed_ref, wee_ref, se_ref, be_ref,
                       wns_ref, wne_ref, sn_ref, bn_ref,
                       wue_ref, sue_ref, bue_ref,
                       eout_ref, m_ref):
    e_attr = e_ref[...]
    src = src_ref[...]
    dst = dst_ref[...]
    # projectDown_edge -> bn1_edge -> ELU
    he0 = _affine_elu(_bdot(e_attr, wde_ref[...]), sde_ref[...], bde_ref[...])
    # EdgeModel.edge_mlp on cat([src, dest, edge_attr]) via split partial matmuls
    y = (_bdot(src, wes_ref[...]) + _bdot(dst, wed_ref[...])
         + _bdot(he0, wee_ref[...]))
    h_edge = _affine_elu(y, se_ref[...], be_ref[...])
    # NodeModel.node_mlp_1 on cat([x[row], edge_attr])
    y = _bdot(src, wns_ref[...]) + _bdot(h_edge, wne_ref[...])
    m_ref[...] = _affine_elu(y, sn_ref[...], bn_ref[...]).astype(m_ref.dtype)
    # projectUp_edge -> bn2_edge -> dropout(identity) -> + residual -> ELU
    y = _bdot(h_edge, wue_ref[...])
    eout_ref[...] = _affine_elu(y, sue_ref[...], bue_ref[...],
                                res=e_attr).astype(eout_ref.dtype)


def _node_fused_kernel(n_ref, h_ref, agg_ref,
                       w2x_ref, w2a_ref, s2_ref, b2_ref,
                       wun_ref, sun_ref, bun_ref, out_ref):
    # NodeModel.node_mlp_2 on cat([x, agg]) via split partial matmuls
    y = _bdot(h_ref[...], w2x_ref[...]) + _bdot(agg_ref[...], w2a_ref[...])
    h2 = _affine_elu(y, s2_ref[...], b2_ref[...])
    # projectUp_node -> bn2_node -> dropout(identity) -> + residual -> ELU
    y = _bdot(h2, wun_ref[...])
    out_ref[...] = _affine_elu(y, sun_ref[...], bun_ref[...],
                               res=n_ref[...]).astype(out_ref.dtype)


def _scatter_mean_kernel(col_ref, m_ref, agg_ref, sums_ref, cnt_ref):
    # grid = (N tiles "parallel", E chunks "arbitrary" = reduction axis)
    k = pl.program_id(1)

    @pl.when(k == 0)
    def _():
        sums_ref[...] = jnp.zeros_like(sums_ref)
        cnt_ref[...] = jnp.zeros_like(cnt_ref)

    tn = sums_ref.shape[0]
    te = m_ref.shape[0]
    base = pl.program_id(0) * tn
    node_ids = jax.lax.broadcasted_iota(jnp.int32, (tn, te), 0) + base
    onehot = (node_ids == col_ref[...]).astype(jnp.bfloat16)          # [tn, te]
    sums_ref[...] += jnp.dot(onehot, m_ref[...],
                             preferred_element_type=jnp.float32)      # MXU
    cnt_ref[...] += jnp.sum(onehot.astype(jnp.float32), axis=1, keepdims=True)

    @pl.when(k == pl.num_programs(1) - 1)
    def _():
        inv = pl.reciprocal(jnp.maximum(cnt_ref[...], 1.0), approx=False)
        agg_ref[...] = (sums_ref[...] * inv).astype(agg_ref.dtype)    # empty node -> 0


# ---------------------------------------------------------------------------
# pallas_call wrappers
# ---------------------------------------------------------------------------
def _row_call(kernel, tm, row_in, const_in, out_info):
    """Row-tiled pallas_call: grid over rows; const_in stays VMEM-resident."""
    rows = row_in[0].shape[0]
    grid = (rows // tm,)
    in_specs = ([pl.BlockSpec((tm, a.shape[1]), lambda i: (i, 0)) for a in row_in]
                + [pl.BlockSpec(a.shape, lambda i: (0, 0)) for a in const_in])
    out_specs = [pl.BlockSpec((tm, d), lambda i: (i, 0)) for d, _ in out_info]
    out_shape = [jax.ShapeDtypeStruct((rows, d), dt) for d, dt in out_info]
    return pl.pallas_call(
        kernel,
        out_shape=out_shape,
        grid_spec=pltpu.PrefetchScalarGridSpec(
            num_scalar_prefetch=0, grid=grid,
            in_specs=in_specs, out_specs=out_specs),
        compiler_params=pltpu.CompilerParams(
            dimension_semantics=("parallel",),
            vmem_limit_bytes=_vmem_limit_bytes()),
    )(*row_in, *const_in)


def scatter_mean_pallas(m, col, n_rows, tn, te):
    e_rows, d = m.shape
    col2d = col.reshape(1, e_rows).astype(jnp.int32)
    return pl.pallas_call(
        _scatter_mean_kernel,
        out_shape=jax.ShapeDtypeStruct((n_rows, d), jnp.bfloat16),
        grid_spec=pltpu.PrefetchScalarGridSpec(
            num_scalar_prefetch=0,
            grid=(n_rows // tn, e_rows // te),
            in_specs=[pl.BlockSpec((1, te), lambda i, k: (0, k)),
                      pl.BlockSpec((te, d), lambda i, k: (k, 0))],
            out_specs=pl.BlockSpec((tn, d), lambda i, k: (i, 0)),
            scratch_shapes=[pltpu.VMEM((tn, d), jnp.float32),
                            pltpu.VMEM((tn, 1), jnp.float32)]),
        compiler_params=pltpu.CompilerParams(
            dimension_semantics=("parallel", "arbitrary"),
            vmem_limit_bytes=_vmem_limit_bytes()),
    )(col2d, m)


# ---------------------------------------------------------------------------
# Parameter init (deterministic, shapes from ResBlockComplex.__init__)
# ---------------------------------------------------------------------------
def init_params(key, C, zero_gamma_up=True):
    """Weights stored bf16 (MXU inputs); folded-BN scale/shift stay f32.
    Concat-MLP weights are split per input block (src / dest / edge, x / agg)."""
    C4 = C // 4
    keys = iter(jax.random.split(key, 64))

    def linear_bn(din, dout, zero_gamma=False):
        bound = float(din) ** -0.5
        w = jax.random.uniform(next(keys), (din, dout), jnp.float32, -bound, bound)
        b = jax.random.uniform(next(keys), (dout,), jnp.float32, -bound, bound)
        gamma = jax.random.uniform(next(keys), (dout,), jnp.float32, 0.5, 1.5)
        if zero_gamma:                      # nn.init.zeros_(bn2_*.weight)
            gamma = jnp.zeros((dout,), jnp.float32)
        beta = jax.random.uniform(next(keys), (dout,), jnp.float32, -0.5, 0.5)
        mean = jax.random.uniform(next(keys), (dout,), jnp.float32, -0.5, 0.5)
        var = jax.random.uniform(next(keys), (dout,), jnp.float32, 0.5, 1.5)
        scale = gamma / jnp.sqrt(var + EPS)          # fold BN (running stats) + bias
        shift = scale * (b - mean) + beta
        return (w.astype(jnp.bfloat16),
                scale.reshape(1, dout), shift.reshape(1, dout))

    p = {}
    p["w_dn"], p["s_dn"], p["b_dn"] = linear_bn(C, C4)       # projectDown_node + bn1_node
    p["w_de"], p["s_de"], p["b_de"] = linear_bn(C, C4)       # projectDown_edge + bn1_edge
    w_e, p["s_e"], p["b_e"] = linear_bn(3 * C4, C4)          # EdgeModel.edge_mlp
    p["w_e_src"], p["w_e_dst"], p["w_e_e"] = w_e[:C4], w_e[C4:2 * C4], w_e[2 * C4:]
    w_n1, p["s_n1"], p["b_n1"] = linear_bn(2 * C4, C4)       # NodeModel.node_mlp_1
    p["w_n1_src"], p["w_n1_e"] = w_n1[:C4], w_n1[C4:]
    w_n2, p["s_n2"], p["b_n2"] = linear_bn(2 * C4, C4)       # NodeModel.node_mlp_2
    p["w_n2_x"], p["w_n2_agg"] = w_n2[:C4], w_n2[C4:]
    p["w_up_n"], p["s_up_n"], p["b_up_n"] = linear_bn(C4, C, zero_gamma_up)  # projectUp_node + bn2_node
    p["w_up_e"], p["s_up_e"], p["b_up_e"] = linear_bn(C4, C, zero_gamma_up)  # projectUp_edge + bn2_edge
    return p


# ---------------------------------------------------------------------------
# ResBlockComplex forward (glue in JAX, compute in Pallas)
# ---------------------------------------------------------------------------
def resblock_forward(params, node_attr, edge_attr, edge_index, batch):
    N, C = node_attr.shape
    E = edge_attr.shape[0]
    C4 = C // 4
    p = params
    row, col = edge_index[0], edge_index[1]

    tmn = _row_tile(N)
    tme = _row_tile(E)
    n_pad = _round_up(N, tmn)
    e_pad = _round_up(E, tme)

    node_p = jnp.pad(node_attr, ((0, n_pad - N), (0, 0)))
    edge_p = jnp.pad(edge_attr, ((0, e_pad - E), (0, 0)))
    row_p = jnp.pad(row, (0, e_pad - E))                      # valid id (gather only)
    col_p = jnp.pad(col, (0, e_pad - E))
    col_sc = jnp.pad(col, (0, e_pad - E), constant_values=N)  # invalid -> no scatter contribution

    # K1: projectDown_node + bn1 + ELU (row grid over nodes)
    (h_node,) = _row_call(
        _down_node_kernel, tmn,
        row_in=[node_p],
        const_in=[p["w_dn"], p["s_dn"], p["b_dn"]],
        out_info=[(C4, jnp.bfloat16)])

    # src/dest gathered once, reused by edge_mlp and node_mlp_1.
    src = jnp.take(h_node, row_p, axis=0)
    dst = jnp.take(h_node, col_p, axis=0)

    # K2: projectDown_edge + edge_mlp + node_mlp_1 + projectUp_edge (row grid over edges)
    edge_out_p, m = _row_call(
        _edge_fused_kernel, tme,
        row_in=[edge_p, src, dst],
        const_in=[p[k] for k in (
            "w_de", "s_de", "b_de",
            "w_e_src", "w_e_dst", "w_e_e", "s_e", "b_e",
            "w_n1_src", "w_n1_e", "s_n1", "b_n1",
            "w_up_e", "s_up_e", "b_up_e")],
        out_info=[(C, jnp.float32), (C4, jnp.bfloat16)])

    # K3: scatter_mean(m, col, dim_size=N) — tiled accumulation
    agg = scatter_mean_pallas(m, col_sc, n_pad, tmn, tme)

    # K4: node_mlp_2 + projectUp_node (row grid over nodes)
    (node_out_p,) = _row_call(
        _node_fused_kernel, tmn,
        row_in=[node_p, h_node, agg],
        const_in=[p[k] for k in (
            "w_n2_x", "w_n2_agg", "s_n2", "b_n2",
            "w_up_n", "s_up_n", "b_up_n")],
        out_info=[(C, jnp.float32)])

    return node_out_p[:N], edge_out_p[:E], edge_index, batch


# ---------------------------------------------------------------------------
# Pure-JAX reference (mirrors the kernels' bf16-matmul / f32-epilogue math)
# ---------------------------------------------------------------------------
def ref_forward(params, node_attr, edge_attr, edge_index):
    p = params
    row, col = edge_index[0], edge_index[1]
    N = node_attr.shape[0]
    C4 = p["w_dn"].shape[1]

    h_node = _affine_elu(_bdot(node_attr, p["w_dn"]),
                         p["s_dn"], p["b_dn"]).astype(jnp.bfloat16)
    src, dst = h_node[row], h_node[col]

    he0 = _affine_elu(_bdot(edge_attr, p["w_de"]), p["s_de"], p["b_de"])
    h_edge = _affine_elu(_bdot(src, p["w_e_src"]) + _bdot(dst, p["w_e_dst"])
                         + _bdot(he0, p["w_e_e"]), p["s_e"], p["b_e"])
    m = _affine_elu(_bdot(src, p["w_n1_src"]) + _bdot(h_edge, p["w_n1_e"]),
                    p["s_n1"], p["b_n1"]).astype(jnp.bfloat16)
    edge_out = _affine_elu(_bdot(h_edge, p["w_up_e"]), p["s_up_e"], p["b_up_e"],
                           res=edge_attr)

    sums = jnp.zeros((N, C4), jnp.float32).at[col].add(m.astype(jnp.float32))
    cnt = jnp.zeros((N, 1), jnp.float32).at[col].add(1.0)
    agg = (sums * (1.0 / jnp.maximum(cnt, 1.0))).astype(jnp.bfloat16)

    h2 = _affine_elu(_bdot(h_node, p["w_n2_x"]) + _bdot(agg, p["w_n2_agg"]),
                     p["s_n2"], p["b_n2"])
    node_out = _affine_elu(_bdot(h2, p["w_up_n"]), p["s_up_n"], p["b_up_n"],
                           res=node_attr)
    return node_out, edge_out


if __name__ == "__main__":
    C, N, E = 32, 8, 16
    key = jax.random.PRNGKey(0)
    k_node, k_edge, k_idx, k_par = jax.random.split(key, 4)

    node_attr = jax.random.normal(k_node, (N, C), jnp.float32)
    edge_attr = jax.random.normal(k_edge, (E, C), jnp.float32)
    edge_index = jax.random.randint(k_idx, (2, E), 0, N, jnp.int32)
    batch = jnp.zeros((N,), jnp.int32)

    fwd = jax.jit(resblock_forward)

    # zero_gamma_up=True  : faithful to nn.init.zeros_(bn2_*.weight)
    # zero_gamma_up=False : also validates the projectUp matmul path
    for zero_gamma_up in (True, False):
        params = init_params(k_par, C, zero_gamma_up=zero_gamma_up)
        node_out, edge_out, _, _ = fwd(params, node_attr, edge_attr, edge_index, batch)
        jax.block_until_ready((node_out, edge_out))

        ref_node, ref_edge = ref_forward(params, node_attr, edge_attr, edge_index)
        assert node_out.shape == (N, C) and edge_out.shape == (E, C)
        assert jnp.allclose(node_out, ref_node, atol=2e-3, rtol=2e-3), (
            float(jnp.max(jnp.abs(node_out - ref_node))))
        assert jnp.allclose(edge_out, ref_edge, atol=2e-3, rtol=2e-3), (
            float(jnp.max(jnp.abs(edge_out - ref_edge))))

    print("KERNEL_OK")
</pallas_src>

<mosaic_0001>
module attributes {stable_mosaic.version = 11 : i64} {
  func.func @_down_node_kernel(%arg0: i32, %arg1: memref<8x32xf32, #tpu.memory_space<vmem>>, %arg2: memref<32x8xbf16, #tpu.memory_space<vmem>>, %arg3: memref<1x8xf32, #tpu.memory_space<vmem>>, %arg4: memref<1x8xf32, #tpu.memory_space<vmem>>, %arg5: memref<8x8xbf16, #tpu.memory_space<vmem>>) attributes {dimension_semantics = [#tpu.dimension_semantics<parallel>], iteration_bounds = array<i64: 1>, scalar_prefetch = 0 : i64, scratch_operands = 0 : i64, tpu.core_type = #tpu.core_type<tc>, window_params = [{transform_indices = @transform_0, window_bounds = array<i64: 8, 32>}, {pipeline_mode = #tpu.pipeline_mode<synchronous>, transform_indices = @transform_1, window_bounds = array<i64: 32, 8>}, {pipeline_mode = #tpu.pipeline_mode<synchronous>, transform_indices = @transform_2, window_bounds = array<i64: 1, 8>}, {pipeline_mode = #tpu.pipeline_mode<synchronous>, transform_indices = @transform_3, window_bounds = array<i64: 1, 8>}, {transform_indices = @transform_4, window_bounds = array<i64: 8, 8>}]} {
    %c0 = arith.constant 0 : index
    %c0_0 = arith.constant 0 : index
    %0 = vector.load %arg1[%c0, %c0_0] : memref<8x32xf32, #tpu.memory_space<vmem>>, vector<8x32xf32>
    %c0_1 = arith.constant 0 : index
    %c0_2 = arith.constant 0 : index
    %1 = vector.load %arg2[%c0_1, %c0_2] : memref<32x8xbf16, #tpu.memory_space<vmem>>, vector<32x8xbf16>
    %2 = arith.truncf %0 : vector<8x32xf32> to vector<8x32xbf16>
    %cst = arith.constant dense<0.000000e+00> : vector<8x8xf32>
    %3 = tpu.matmul %2, %1, %cst {dimension_numbers = #tpu.dot_dimension_numbers<[1], [0], [0], [1], [0, 0, 1, 1], [], []>} : vector<8x32xbf16>, vector<32x8xbf16>, vector<8x8xf32> -> vector<8x8xf32>
    %c0_3 = arith.constant 0 : index
    %c0_4 = arith.constant 0 : index
    %4 = vector.load %arg3[%c0_3, %c0_4] : memref<1x8xf32, #tpu.memory_space<vmem>>, vector<1x8xf32>
    %c0_5 = arith.constant 0 : index
    %c0_6 = arith.constant 0 : index
    %5 = vector.load %arg4[%c0_5, %c0_6] : memref<1x8xf32, #tpu.memory_space<vmem>>, vector<1x8xf32>
    %6 = vector.broadcast %4 : vector<1x8xf32> to vector<8x8xf32>
    %7 = arith.mulf %3, %6 : vector<8x8xf32>
    %8 = vector.broadcast %5 : vector<1x8xf32> to vector<8x8xf32>
    %9 = arith.addf %7, %8 : vector<8x8xf32>
    %cst_7 = arith.constant 0.000000e+00 : f32
    %10 = vector.broadcast %cst_7 : f32 to vector<8x8xf32>
    %11 = arith.cmpf ogt, %9, %10 : vector<8x8xf32>
    %cst_8 = arith.constant 0.000000e+00 : f32
    %12 = vector.broadcast %cst_8 : f32 to vector<8x8xf32>
    %13 = arith.minimumf %9, %12 : vector<8x8xf32>
    %14 = math.exp %13 : vector<8x8xf32>
    %cst_9 = arith.constant 1.000000e+00 : f32
    %15 = vector.broadcast %cst_9 : f32 to vector<8x8xf32>
    %16 = arith.subf %14, %15 : vector<8x8xf32>
    %17 = arith.select %11, %9, %16 : vector<8x8xi1>, vector<8x8xf32>
    %18 = arith.truncf %17 : vector<8x8xf32> to vector<8x8xbf16>
    %c0_10 = arith.constant 0 : index
    %c0_11 = arith.constant 0 : index
    %19 = vector.load %arg5[%c0_10, %c0_11] : memref<8x8xbf16, #tpu.memory_space<vmem>>, vector<8x8xbf16>
    tpu.vector_store %arg5[%c0_10, %c0_11], %18 {strides = array<i32>} : memref<8x8xbf16, #tpu.memory_space<vmem>>, vector<8x8xbf16>,
    return
  }
  func.func @transform_0(%arg0: i32) -> (i32, i32) {
    %c0_i32 = arith.constant 0 : i32
    %c0_i32_0 = arith.constant 0 : i32
    return %arg0, %c0_i32 : i32, i32
  }
  func.func @transform_1(%arg0: i32) -> (i32, i32) {
    %c0_i32 = arith.constant 0 : i32
    %c0_i32_0 = arith.constant 0 : i32
    %c0_i32_1 = arith.constant 0 : i32
    return %c0_i32, %c0_i32_0 : i32, i32
  }
  func.func @transform_2(%arg0: i32) -> (i32, i32) {
    %c0_i32 = arith.constant 0 : i32
    %c0_i32_0 = arith.constant 0 : i32
    %c0_i32_1 = arith.constant 0 : i32
    return %c0_i32, %c0_i32_0 : i32, i32
  }
  func.func @transform_3(%arg0: i32) -> (i32, i32) {
    %c0_i32 = arith.constant 0 : i32
    %c0_i32_0 = arith.constant 0 : i32
    %c0_i32_1 = arith.constant 0 : i32
    return %c0_i32, %c0_i32_0 : i32, i32
  }
  func.func @transform_4(%arg0: i32) -> (i32, i32) {
    %c0_i32 = arith.constant 0 : i32
    %c0_i32_0 = arith.constant 0 : i32
    return %arg0, %c0_i32 : i32, i32
  }
}

module attributes {stable_mosaic.version = 11 : i64} {
  func.func @_edge_fused_kernel(%arg0: i32, %arg1: memref<16x32xf32, #tpu.memory_space<vmem>>, %arg2: memref<16x8xbf16, #tpu.memory_space<vmem>>, %arg3: memref<16x8xbf16, #tpu.memory_space<vmem>>, %arg4: memref<32x8xbf16, #tpu.memory_space<vmem>>, %arg5: memref<1x8xf32, #tpu.memory_space<vmem>>, %arg6: memref<1x8xf32, #tpu.memory_space<vmem>>, %arg7: memref<8x8xbf16, #tpu.memory_space<vmem>>, %arg8: memref<8x8xbf16, #tpu.memory_space<vmem>>, %arg9: memref<8x8xbf16, #tpu.memory_space<vmem>>, %arg10: memref<1x8xf32, #tpu.memory_space<vmem>>, %arg11: memref<1x8xf32, #tpu.memory_space<vmem>>, %arg12: memref<8x8xbf16, #tpu.memory_space<vmem>>, %arg13: memref<8x8xbf16, #tpu.memory_space<vmem>>, %arg14: memref<1x8xf32, #tpu.memory_space<vmem>>, %arg15: memref<1x8xf32, #tpu.memory_space<vmem>>, %arg16: memref<8x32xbf16, #tpu.memory_space<vmem>>, %arg17: memref<1x32xf32, #tpu.memory_space<vmem>>, %arg18: memref<1x32xf32, #tpu.memory_space<vmem>>, %arg19: memref<16x32xf32, #tpu.memory_space<vmem>>, %arg20: memref<16x8xbf16, #tpu.memory_space<vmem>>) attributes {dimension_semantics = [#tpu.dimension_semantics<parallel>], iteration_bounds = array<i64: 1>, scalar_prefetch = 0 : i64, scratch_operands = 0 : i64, tpu.core_type = #tpu.core_type<tc>, window_params = [{transform_indices = @transform_0, window_bounds = array<i64: 16, 32>}, {transform_indices = @transform_1, window_bounds = array<i64: 16, 8>}, {transform_indices = @transform_2, window_bounds = array<i64: 16, 8>}, {pipeline_mode = #tpu.pipeline_mode<synchronous>, transform_indices = @transform_3, window_bounds = array<i64: 32, 8>}, {pipeline_mode = #tpu.pipeline_mode<synchronous>, transform_indices = @transform_4, window_bounds = array<i64: 1, 8>}, {pipeline_mode = #tpu.pipeline_mode<synchronous>, transform_indices = @transform_5, window_bounds = array<i64: 1, 8>}, {pipeline_mode = #tpu.pipeline_mode<synchronous>, transform_indices = @transform_6, window_bounds = array<i64: 8, 8>}, {pipeline_mode = #tpu.pipeline_mode<synchronous>, transform_indices = @transform_7, window_bounds = array<i64: 8, 8>}, {pipeline_mode = #tpu.pipeline_mode<synchronous>, transform_indices = @transform_8, window_bounds = array<i64: 8, 8>}, {pipeline_mode = #tpu.pipeline_mode<synchronous>, transform_indices = @transform_9, window_bounds = array<i64: 1, 8>}, {pipeline_mode = #tpu.pipeline_mode<synchronous>, transform_indices = @transform_10, window_bounds = array<i64: 1, 8>}, {pipeline_mode = #tpu.pipeline_mode<synchronous>, transform_indices = @transform_11, window_bounds = array<i64: 8, 8>}, {pipeline_mode = #tpu.pipeline_mode<synchronous>, transform_indices = @transform_12, window_bounds = array<i64: 8, 8>}, {pipeline_mode = #tpu.pipeline_mode<synchronous>, transform_indices = @transform_13, window_bounds = array<i64: 1, 8>}, {pipeline_mode = #tpu.pipeline_mode<synchronous>, transform_indices = @transform_14, window_bounds = array<i64: 1, 8>}, {pipeline_mode = #tpu.pipeline_mode<synchronous>, transform_indices = @transform_15, window_bounds = array<i64: 8, 32>}, {pipeline_mode = #tpu.pipeline_mode<synchronous>, transform_indices = @transform_16, window_bounds = array<i64: 1, 32>}, {pipeline_mode = #tpu.pipeline_mode<synchronous>, transform_indices = @transform_17, window_bounds = array<i64: 1, 32>}, {transform_indices = @transform_18, window_bounds = array<i64: 16, 32>}, {transform_indices = @transform_19, window_bounds = array<i64: 16, 8>}]} {
    %c0 = arith.constant 0 : index
    %c0_0 = arith.constant 0 : index
    %0 = vector.load %arg1[%c0, %c0_0] : memref<16x32xf32, #tpu.memory_space<vmem>>, vector<16x32xf32>
    %c0_1 = arith.constant 0 : index
    %c0_2 = arith.constant 0 : index
    %1 = vector.load %arg2[%c0_1, %c0_2] : memref<16x8xbf16, #tpu.memory_space<vmem>>, vector<16x8xbf16>
    %c0_3 = arith.constant 0 : index
    %c0_4 = arith.constant 0 : index
    %2 = vector.load %arg3[%c0_3, %c0_4] : memref<16x8xbf16, #tpu.memory_space<vmem>>, vector<16x8xbf16>
    %c0_5 = arith.constant 0 : index
    %c0_6 = arith.constant 0 : index
    %3 = vector.load %arg4[%c0_5, %c0_6] : memref<32x8xbf16, #tpu.memory_space<vmem>>, vector<32x8xbf16>
    %4 = arith.truncf %0 : vector<16x32xf32> to vector<16x32xbf16>
    %cst = arith.constant dense<0.000000e+00> : vector<16x8xf32>
    %5 = tpu.matmul %4, %3, %cst {dimension_numbers = #tpu.dot_dimension_numbers<[1], [0], [0], [1], [0, 0, 1, 1], [], []>} : vector<16x32xbf16>, vector<32x8xbf16>, vector<16x8xf32> -> vector<16x8xf32>
    %c0_7 = arith.constant 0 : index
    %c0_8 = arith.constant 0 : index
    %6 = vector.load %arg5[%c0_7, %c0_8] : memref<1x8xf32, #tpu.memory_space<vmem>>, vector<1x8xf32>
    %c0_9 = arith.constant 0 : index
    %c0_10 = arith.constant 0 : index
    %7 = vector.load %arg6[%c0_9, %c0_10] : memref<1x8xf32, #tpu.memory_space<vmem>>, vector<1x8xf32>
    %8 = vector.broadcast %6 : vector<1x8xf32> to vector<16x8xf32>
    %9 = arith.mulf %5, %8 : vector<16x8xf32>
    %10 = vector.broadcast %7 : vector<1x8xf32> to vector<16x8xf32>
    %11 = arith.addf %9, %10 : vector<16x8xf32>
    %cst_11 = arith.constant 0.000000e+00 : f32
    %12 = vector.broadcast %cst_11 : f32 to vector<16x8xf32>
    %13 = arith.cmpf ogt, %11, %12 : vector<16x8xf32>
    %cst_12 = arith.constant 0.000000e+00 : f32
    %14 = vector.broadcast %cst_12 : f32 to vector<16x8xf32>
    %15 = arith.minimumf %11, %14 : vector<16x8xf32>
    %16 = math.exp %15 : vector<16x8xf32>
    %cst_13 = arith.constant 1.000000e+00 : f32
    %17 = vector.broadcast %cst_13 : f32 to vector<16x8xf32>
    %18 = arith.subf %16, %17 : vector<16x8xf32>
    %19 = arith.select %13, %11, %18 : vector<16x8xi1>, vector<16x8xf32>
    %c0_14 = arith.constant 0 : index
    %c0_15 = arith.constant 0 : index
    %20 = vector.load %arg7[%c0_14, %c0_15] : memref<8x8xbf16, #tpu.memory_space<vmem>>, vector<8x8xbf16>
    %cst_16 = arith.constant dense<0.000000e+00> : vector<16x8xf32>
    %21 = tpu.matmul %1, %20, %cst_16 {dimension_numbers = #tpu.dot_dimension_numbers<[1], [0], [0], [1], [0, 0, 1, 1], [], []>} : vector<16x8xbf16>, vector<8x8xbf16>, vector<16x8xf32> -> vector<16x8xf32>
    %c0_17 = arith.constant 0 : index
    %c0_18 = arith.constant 0 : index
    %22 = vector.load %arg8[%c0_17, %c0_18] : memref<8x8xbf16, #tpu.memory_space<vmem>>, vector<8x8xbf16>
    %cst_19 = arith.constant dense<0.000000e+00> : vector<16x8xf32>
    %23 = tpu.matmul %2, %22, %cst_19 {dimension_numbers = #tpu.dot_dimension_numbers<[1], [0], [0], [1], [0, 0, 1, 1], [], []>} : vector<16x8xbf16>, vector<8x8xbf16>, vector<16x8xf32> -> vector<16x8xf32>
    %24 = arith.addf %21, %23 : vector<16x8xf32>
    %c0_20 = arith.constant 0 : index
    %c0_21 = arith.constant 0 : index
    %25 = vector.load %arg9[%c0_20, %c0_21] : memref<8x8xbf16, #tpu.memory_space<vmem>>, vector<8x8xbf16>
    %26 = arith.truncf %19 : vector<16x8xf32> to vector<16x8xbf16>
    %cst_22 = arith.constant dense<0.000000e+00> : vector<16x8xf32>
    %27 = tpu.matmul %26, %25, %cst_22 {dimension_numbers = #tpu.dot_dimension_numbers<[1], [0], [0], [1], [0, 0, 1, 1], [], []>} : vector<16x8xbf16>, vector<8x8xbf16>, vector<16x8xf32> -> vector<16x8xf32>
    %28 = arith.addf %24, %27 : vector<16x8xf32>
    %c0_23 = arith.constant 0 : index
    %c0_24 = arith.constant 0 : index
    %29 = vector.load %arg10[%c0_23, %c0_24] : memref<1x8xf32, #tpu.memory_space<vmem>>, vector<1x8xf32>
    %c0_25 = arith.constant 0 : index
    %c0_26 = arith.constant 0 : index
    %30 = vector.load %arg11[%c0_25, %c0_26] : memref<1x8xf32, #tpu.memory_space<vmem>>, vector<1x8xf32>
    %31 = vector.broadcast %29 : vector<1x8xf32> to vector<16x8xf32>
    %32 = arith.mulf %28, %31 : vector<16x8xf32>
    %33 = vector.broadcast %30 : vector<1x8xf32> to vector<16x8xf32>
    %34 = arith.addf %32, %33 : vector<16x8xf32>
    %cst_27 = arith.constant 0.000000e+00 : f32
    %35 = vector.broadcast %cst_27 : f32 to vector<16x8xf32>
    %36 = arith.cmpf ogt, %34, %35 : vector<16x8xf32>
    %cst_28 = arith.constant 0.000000e+00 : f32
    %37 = vector.broadcast %cst_28 : f32 to vector<16x8xf32>
    %38 = arith.minimumf %34, %37 : vector<16x8xf32>
    %39 = math.exp %38 : vector<16x8xf32>
    %cst_29 = arith.constant 1.000000e+00 : f32
    %40 = vector.broadcast %cst_29 : f32 to vector<16x8xf32>
    %41 = arith.subf %39, %40 : vector<16x8xf32>
    %42 = arith.select %36, %34, %41 : vector<16x8xi1>, vector<16x8xf32>
    %c0_30 = arith.constant 0 : index
    %c0_31 = arith.constant 0 : index
    %43 = vector.load %arg12[%c0_30, %c0_31] : memref<8x8xbf16, #tpu.memory_space<vmem>>, vector<8x8xbf16>
    %cst_32 = arith.constant dense<0.000000e+00> : vector<16x8xf32>
    %44 = tpu.matmul %1, %43, %cst_32 {dimension_numbers = #tpu.dot_dimension_numbers<[1], [0], [0], [1], [0, 0, 1, 1], [], []>} : vector<16x8xbf16>, vector<8x8xbf16>, vector<16x8xf32> -> vector<16x8xf32>
    %c0_33 = arith.constant 0 : index
    %c0_34 = arith.constant 0 : index
    %45 = vector.load %arg13[%c0_33, %c0_34] : memref<8x8xbf16, #tpu.memory_space<vmem>>, vector<8x8xbf16>
    %46 = arith.truncf %42 : vector<16x8xf32> to vector<16x8xbf16>
    %cst_35 = arith.constant dense<0.000000e+00> : vector<16x8xf32>
    %47 = tpu.matmul %46, %45, %cst_35 {dimension_numbers = #tpu.dot_dimension_numbers<[1], [0], [0], [1], [0, 0, 1, 1], [], []>} : vector<16x8xbf16>, vector<8x8xbf16>, vector<16x8xf32> -> vector<16x8xf32>
    %48 = arith.addf %44, %47 : vector<16x8xf32>
    %c0_36 = arith.constant 0 : index
    %c0_37 = arith.constant 0 : index
    %49 = vector.load %arg14[%c0_36, %c0_37] : memref<1x8xf32, #tpu.memory_space<vmem>>, vector<1x8xf32>
    %c0_38 = arith.constant 0 : index
    %c0_39 = arith.constant 0 : index
    %50 = vector.load %arg15[%c0_38, %c0_39] : memref<1x8xf32, #tpu.memory_space<vmem>>, vector<1x8xf32>
    %51 = vector.broadcast %49 : vector<1x8xf32> to vector<16x8xf32>
    %52 = arith.mulf %48, %51 : vector<16x8xf32>
    %53 = vector.broadcast %50 : vector<1x8xf32> to vector<16x8xf32>
    %54 = arith.addf %52, %53 : vector<16x8xf32>
    %cst_40 = arith.constant 0.000000e+00 : f32
    %55 = vector.broadcast %cst_40 : f32 to vector<16x8xf32>
    %56 = arith.cmpf ogt, %54, %55 : vector<16x8xf32>
    %cst_41 = arith.constant 0.000000e+00 : f32
    %57 = vector.broadcast %cst_41 : f32 to vector<16x8xf32>
    %58 = arith.minimumf %54, %57 : vector<16x8xf32>
    %59 = math.exp %58 : vector<16x8xf32>
    %cst_42 = arith.constant 1.000000e+00 : f32
    %60 = vector.broadcast %cst_42 : f32 to vector<16x8xf32>
    %61 = arith.subf %59, %60 : vector<16x8xf32>
    %62 = arith.select %56, %54, %61 : vector<16x8xi1>, vector<16x8xf32>
    %63 = arith.truncf %62 : vector<16x8xf32> to vector<16x8xbf16>
    %c0_43 = arith.constant 0 : index
    %c0_44 = arith.constant 0 : index
    %64 = vector.load %arg20[%c0_43, %c0_44] : memref<16x8xbf16, #tpu.memory_space<vmem>>, vector<16x8xbf16>
    tpu.vector_store %arg20[%c0_43, %c0_44], %63 {strides = array<i32>} : memref<16x8xbf16, #tpu.memory_space<vmem>>, vector<16x8xbf16>,
    %c0_45 = arith.constant 0 : index
    %c0_46 = arith.constant 0 : index
    %65 = vector.load %arg16[%c0_45, %c0_46] : memref<8x32xbf16, #tpu.memory_space<vmem>>, vector<8x32xbf16>
    %66 = arith.truncf %42 : vector<16x8xf32> to vector<16x8xbf16>
    %cst_47 = arith.constant dense<0.000000e+00> : vector<16x32xf32>
    %67 = tpu.matmul %66, %65, %cst_47 {dimension_numbers = #tpu.dot_dimension_numbers<[1], [0], [0], [1], [0, 0, 1, 1], [], []>} : vector<16x8xbf16>, vector<8x32xbf16>, vector<16x32xf32> -> vector<16x32xf32>
    %c0_48 = arith.constant 0 : index
    %c0_49 = arith.constant 0 : index
    %68 = vector.load %arg17[%c0_48, %c0_49] : memref<1x32xf32, #tpu.memory_space<vmem>>, vector<1x32xf32>
    %c0_50 = arith.constant 0 : index
    %c0_51 = arith.constant 0 : index
    %69 = vector.load %arg18[%c0_50, %c0_51] : memref<1x32xf32, #tpu.memory_space<vmem>>, vector<1x32xf32>
    %70 = vector.broadcast %68 : vector<1x32xf32> to vector<16x32xf32>
    %71 = arith.mulf %67, %70 : vector<16x32xf32>
    %72 = vector.broadcast %69 : vector<1x32xf32> to vector<16x32xf32>
    %73 = arith.addf %71, %72 : vector<16x32xf32>
    %74 = arith.addf %73, %0 : vector<16x32xf32>
    %cst_52 = arith.constant 0.000000e+00 : f32
    %75 = vector.broadcast %cst_52 : f32 to vector<16x32xf32>
    %76 = arith.cmpf ogt, %74, %75 : vector<16x32xf32>
    %cst_53 = arith.constant 0.000000e+00 : f32
    %77 = vector.broadcast %cst_53 : f32 to vector<16x32xf32>
    %78 = arith.minimumf %74, %77 : vector<16x32xf32>
    %79 = math.exp %78 : vector<16x32xf32>
    %cst_54 = arith.constant 1.000000e+00 : f32
    %80 = vector.broadcast %cst_54 : f32 to vector<16x32xf32>
    %81 = arith.subf %79, %80 : vector<16x32xf32>
    %82 = arith.select %76, %74, %81 : vector<16x32xi1>, vector<16x32xf32>
    %c0_55 = arith.constant 0 : index
    %c0_56 = arith.constant 0 : index
    %83 = vector.load %arg19[%c0_55, %c0_56] : memref<16x32xf32, #tpu.memory_space<vmem>>, vector<16x32xf32>
    tpu.vector_store %arg19[%c0_55, %c0_56], %82 {strides = array<i32>} : memref<16x32xf32, #tpu.memory_space<vmem>>, vector<16x32xf32>,
    return
  }
  func.func @transform_0(%arg0: i32) -> (i32, i32) {
    %c0_i32 = arith.constant 0 : i32
    %c0_i32_0 = arith.constant 0 : i32
    return %arg0, %c0_i32 : i32, i32
  }
  func.func @transform_1(%arg0: i32) -> (i32, i32) {
    %c0_i32 = arith.constant 0 : i32
    %c0_i32_0 = arith.constant 0 : i32
    return %arg0, %c0_i32 : i32, i32
  }
  func.func @transform_2(%arg0: i32) -> (i32, i32) {
    %c0_i32 = arith.constant 0 : i32
    %c0_i32_0 = arith.constant 0 : i32
    return %arg0, %c0_i32 : i32, i32
  }
  func.func @transform_3(%arg0: i32) -> (i32, i32) {
    %c0_i32 = arith.constant 0 : i32
    %c0_i32_0 = arith.constant 0 : i32
    %c0_i32_1 = arith.constant 0 : i32
    return %c0_i32, %c0_i32_0 : i32, i32
  }
  func.func @transform_4(%arg0: i32) -> (i32, i32) {
    %c0_i32 = arith.constant 0 : i32
    %c0_i32_0 = arith.constant 0 : i32
    %c0_i32_1 = arith.constant 0 : i32
    return %c0_i32, %c0_i32_0 : i32, i32
  }
  func.func @transform_5(%arg0: i32) -> (i32, i32) {
    %c0_i32 = arith.constant 0 : i32
    %c0_i32_0 = arith.constant 0 : i32
    %c0_i32_1 = arith.constant 0 : i32
    return %c0_i32, %c0_i32_0 : i32, i32
  }
  func.func @transform_6(%arg0: i32) -> (i32, i32) {
    %c0_i32 = arith.constant 0 : i32
    %c0_i32_0 = arith.constant 0 : i32
    %c0_i32_1 = arith.constant 0 : i32
    return %c0_i32, %c0_i32_0 : i32, i32
  }
  func.func @transform_7(%arg0: i32) -> (i32, i32) {
    %c0_i32 = arith.constant 0 : i32
    %c0_i32_0 = arith.constant 0 : i32
    %c0_i32_1 = arith.constant 0 : i32
    return %c0_i32, %c0_i32_0 : i32, i32
  }
  func.func @transform_8(%arg0: i32) -> (i32, i32) {
    %c0_i32 = arith.constant 0 : i32
    %c0_i32_0 = arith.constant 0 : i32
    %c0_i32_1 = arith.constant 0 : i32
    return %c0_i32, %c0_i32_0 : i32, i32
  }
  func.func @transform_9(%arg0: i32) -> (i32, i32) {
    %c0_i32 = arith.constant 0 : i32
    %c0_i32_0 = arith.constant 0 : i32
    %c0_i32_1 = arith.constant 0 : i32
    return %c0_i32, %c0_i32_0 : i32, i32
  }
  func.func @transform_10(%arg0: i32) -> (i32, i32) {
    %c0_i32 = arith.constant 0 : i32
    %c0_i32_0 = arith.constant 0 : i32
    %c0_i32_1 = arith.constant 0 : i32
    return %c0_i32, %c0_i32_0 : i32, i32
  }
  func.func @transform_11(%arg0: i32) -> (i32, i32) {
    %c0_i32 = arith.constant 0 : i32
    %c0_i32_0 = arith.constant 0 : i32
    %c0_i32_1 = arith.constant 0 : i32
    return %c0_i32, %c0_i32_0 : i32, i32
  }
  func.func @transform_12(%arg0: i32) -> (i32, i32) {
    %c0_i32 = arith.constant 0 : i32
    %c0_i32_0 = arith.constant 0 : i32
    %c0_i32_1 = arith.constant 0 : i32
    return %c0_i32, %c0_i32_0 : i32, i32
  }
  func.func @transform_13(%arg0: i32) -> (i32, i32) {
    %c0_i32 = arith.constant 0 : i32
    %c0_i32_0 = arith.constant 0 : i32
    %c0_i32_1 = arith.constant 0 : i32
    return %c0_i32, %c0_i32_0 : i32, i32
  }
  func.func @transform_14(%arg0: i32) -> (i32, i32) {
    %c0_i32 = arith.constant 0 : i32
    %c0_i32_0 = arith.constant 0 : i32
    %c0_i32_1 = arith.constant 0 : i32
    return %c0_i32, %c0_i32_0 : i32, i32
  }
  func.func @transform_15(%arg0: i32) -> (i32, i32) {
    %c0_i32 = arith.constant 0 : i32
    %c0_i32_0 = arith.constant 0 : i32
    %c0_i32_1 = arith.constant 0 : i32
    return %c0_i32, %c0_i32_0 : i32, i32
  }
  func.func @transform_16(%arg0: i32) -> (i32, i32) {
    %c0_i32 = arith.constant 0 : i32
    %c0_i32_0 = arith.constant 0 : i32
    %c0_i32_1 = arith.constant 0 : i32
    return %c0_i32, %c0_i32_0 : i32, i32
  }
  func.func @transform_17(%arg0: i32) -> (i32, i32) {
    %c0_i32 = arith.constant 0 : i32
    %c0_i32_0 = arith.constant 0 : i32
    %c0_i32_1 = arith.constant 0 : i32
    return %c0_i32, %c0_i32_0 : i32, i32
  }
  func.func @transform_18(%arg0: i32) -> (i32, i32) {
    %c0_i32 = arith.constant 0 : i32
    %c0_i32_0 = arith.constant 0 : i32
    return %arg0, %c0_i32 : i32, i32
  }
  func.func @transform_19(%arg0: i32) -> (i32, i32) {
    %c0_i32 = arith.constant 0 : i32
    %c0_i32_0 = arith.constant 0 : i32
    return %arg0, %c0_i32 : i32, i32
  }
}

module attributes {stable_mosaic.version = 11 : i64} {
  func.func @_scatter_mean_kernel(%arg0: i32, %arg1: i32, %arg2: memref<1x16xi32, #tpu.memory_space<vmem>>, %arg3: memref<16x8xbf16, #tpu.memory_space<vmem>>, %arg4: memref<8x8xbf16, #tpu.memory_space<vmem>>, %arg5: memref<8x8xf32, #tpu.memory_space<vmem>>, %arg6: memref<8x1xf32, #tpu.memory_space<vmem>>) attributes {dimension_semantics = [#tpu.dimension_semantics<parallel>, #tpu.dimension_semantics<arbitrary>], iteration_bounds = array<i64: 1, 1>, scalar_prefetch = 0 : i64, scratch_operands = 2 : i64, tpu.core_type = #tpu.core_type<tc>, window_params = [{transform_indices = @transform_0, window_bounds = array<i64: 1, 16>}, {transform_indices = @transform_1, window_bounds = array<i64: 16, 8>}, {transform_indices = @transform_2, window_bounds = array<i64: 8, 8>}]} {
    %c0_i32 = arith.constant 0 : i32
    %0 = arith.cmpi eq, %arg1, %c0_i32 : i32
    %1 = arith.extui %0 : i1 to i32
    %c0_i32_0 = arith.constant 0 : i32
    %2 = arith.cmpi ne, %1, %c0_i32_0 : i32
    scf.if %2 {
      %cst_15 = arith.constant 0.000000e+00 : f32
      %27 = vector.broadcast %cst_15 : f32 to vector<8x8xf32>
      %c0_16 = arith.constant 0 : index
      %c0_17 = arith.constant 0 : index
      %28 = vector.load %arg5[%c0_16, %c0_17] : memref<8x8xf32, #tpu.memory_space<vmem>>, vector<8x8xf32>
      tpu.vector_store %arg5[%c0_16, %c0_17], %27 {strides = array<i32>} : memref<8x8xf32, #tpu.memory_space<vmem>>, vector<8x8xf32>,
      %cst_18 = arith.constant 0.000000e+00 : f32
      %29 = vector.broadcast %cst_18 : f32 to vector<8x1xf32>
      %c0_19 = arith.constant 0 : index
      %c0_20 = arith.constant 0 : index
      %30 = vector.load %arg6[%c0_19, %c0_20] : memref<8x1xf32, #tpu.memory_space<vmem>>, vector<8x1xf32>
      tpu.vector_store %arg6[%c0_19, %c0_20], %29 {strides = array<i32>} : memref<8x1xf32, #tpu.memory_space<vmem>>, vector<8x1xf32>,
    } else {
    }
    %c8_i32 = arith.constant 8 : i32
    %3 = arith.muli %arg0, %c8_i32 : i32
    %4 = tpu.iota {dimensions = array<i32: 0>} : vector<8x16xi32>
    %5 = vector.broadcast %3 : i32 to vector<8x16xi32>
    %6 = arith.addi %4, %5 : vector<8x16xi32>
    %c0 = arith.constant 0 : index
    %c0_1 = arith.constant 0 : index
    %7 = vector.load %arg2[%c0, %c0_1] : memref<1x16xi32, #tpu.memory_space<vmem>>, vector<1x16xi32>
    %8 = vector.broadcast %7 : vector<1x16xi32> to vector<8x16xi32>
    %9 = arith.cmpi eq, %6, %8 : vector<8x16xi32>
    %10 = arith.extui %9 : vector<8x16xi1> to vector<8x16xi32>
    %11 = arith.sitofp %10 : vector<8x16xi32> to vector<8x16xf32>
    %12 = arith.truncf %11 : vector<8x16xf32> to vector<8x16xbf16>
    %c0_2 = arith.constant 0 : index
    %c0_3 = arith.constant 0 : index
    %13 = vector.load %arg5[%c0_2, %c0_3] : memref<8x8xf32, #tpu.memory_space<vmem>>, vector<8x8xf32>
    %c0_4 = arith.constant 0 : index
    %c0_5 = arith.constant 0 : index
    %14 = vector.load %arg3[%c0_4, %c0_5] : memref<16x8xbf16, #tpu.memory_space<vmem>>, vector<16x8xbf16>
    %cst = arith.constant dense<0.000000e+00> : vector<8x8xf32>
    %15 = tpu.matmul %12, %14, %cst {dimension_numbers = #tpu.dot_dimension_numbers<[1], [0], [0], [1], [0, 0, 1, 1], [], []>} : vector<8x16xbf16>, vector<16x8xbf16>, vector<8x8xf32> -> vector<8x8xf32>
    %16 = arith.addf %13, %15 : vector<8x8xf32>
    %c0_6 = arith.constant 0 : index
    %c0_7 = arith.constant 0 : index
    %17 = vector.load %arg5[%c0_6, %c0_7] : memref<8x8xf32, #tpu.memory_space<vmem>>, vector<8x8xf32>
    tpu.vector_store %arg5[%c0_6, %c0_7], %16 {strides = array<i32>} : memref<8x8xf32, #tpu.memory_space<vmem>>, vector<8x8xf32>,
    %c0_8 = arith.constant 0 : index
    %c0_9 = arith.constant 0 : index
    %18 = vector.load %arg6[%c0_8, %c0_9] : memref<8x1xf32, #tpu.memory_space<vmem>>, vector<8x1xf32>
    %19 = arith.extf %12 : vector<8x16xbf16> to vector<8x16xf32>
    %cst_10 = arith.constant dense<0.000000e+00> : vector<8xf32>
    %20 = vector.multi_reduction <add>, %19, %cst_10 [1] : vector<8x16xf32> to vector<8xf32>
    %21 = vector.shape_cast %20 : vector<8xf32> to vector<8x1xf32>
    %22 = arith.addf %18, %21 : vector<8x1xf32>
    %c0_11 = arith.constant 0 : index
    %c0_12 = arith.constant 0 : index
    %23 = vector.load %arg6[%c0_11, %c0_12] : memref<8x1xf32, #tpu.memory_space<vmem>>, vector<8x1xf32>
    tpu.vector_store %arg6[%c0_11, %c0_12], %22 {strides = array<i32>} : memref<8x1xf32, #tpu.memory_space<vmem>>, vector<8x1xf32>,
    %c0_i32_13 = arith.constant 0 : i32
    %24 = arith.cmpi eq, %arg1, %c0_i32_13 : i32
    %25 = arith.extui %24 : i1 to i32
    %c0_i32_14 = arith.constant 0 : i32
    %26 = arith.cmpi ne, %25, %c0_i32_14 : i32
    scf.if %26 {
      %c0_15 = arith.constant 0 : index
      %c0_16 = arith.constant 0 : index
      %27 = vector.load %arg6[%c0_15, %c0_16] : memref<8x1xf32, #tpu.memory_space<vmem>>, vector<8x1xf32>
      %cst_17 = arith.constant 1.000000e+00 : f32
      %28 = vector.broadcast %cst_17 : f32 to vector<8x1xf32>
      %29 = arith.maximumf %27, %28 : vector<8x1xf32>
      %30 = tpu.reciprocal %29 : vector<8x1xf32> -> vector<8x1xf32>
      %c0_18 = arith.constant 0 : index
      %c0_19 = arith.constant 0 : index
      %31 = vector.load %arg5[%c0_18, %c0_19] : memref<8x8xf32, #tpu.memory_space<vmem>>, vector<8x8xf32>
      %32 = vector.broadcast %30 : vector<8x1xf32> to vector<8x8xf32>
      %33 = arith.mulf %31, %32 : vector<8x8xf32>
      %34 = arith.truncf %33 : vector<8x8xf32> to vector<8x8xbf16>
      %c0_20 = arith.constant 0 : index
      %c0_21 = arith.constant 0 : index
      %35 = vector.load %arg4[%c0_20, %c0_21] : memref<8x8xbf16, #tpu.memory_space<vmem>>, vector<8x8xbf16>
      tpu.vector_store %arg4[%c0_20, %c0_21], %34 {strides = array<i32>} : memref<8x8xbf16, #tpu.memory_space<vmem>>, vector<8x8xbf16>,
    } else {
    }
    return
  }
  func.func @transform_0(%arg0: i32, %arg1: i32) -> (i32, i32) {
    %c0_i32 = arith.constant 0 : i32
    %c0_i32_0 = arith.constant 0 : i32
    return %c0_i32, %arg1 : i32, i32
  }
  func.func @transform_1(%arg0: i32, %arg1: i32) -> (i32, i32) {
    %c0_i32 = arith.constant 0 : i32
    %c0_i32_0 = arith.constant 0 : i32
    return %arg1, %c0_i32 : i32, i32
  }
  func.func @transform_2(%arg0: i32, %arg1: i32) -> (i32, i32) {
    %c0_i32 = arith.constant 0 : i32
    %c0_i32_0 = arith.constant 0 : i32
    return %arg0, %c0_i32 : i32, i32
  }
}

module attributes {stable_mosaic.version = 11 : i64} {
  func.func @_node_fused_kernel(%arg0: i32, %arg1: memref<8x32xf32, #tpu.memory_space<vmem>>, %arg2: memref<8x8xbf16, #tpu.memory_space<vmem>>, %arg3: memref<8x8xbf16, #tpu.memory_space<vmem>>, %arg4: memref<8x8xbf16, #tpu.memory_space<vmem>>, %arg5: memref<8x8xbf16, #tpu.memory_space<vmem>>, %arg6: memref<1x8xf32, #tpu.memory_space<vmem>>, %arg7: memref<1x8xf32, #tpu.memory_space<vmem>>, %arg8: memref<8x32xbf16, #tpu.memory_space<vmem>>, %arg9: memref<1x32xf32, #tpu.memory_space<vmem>>, %arg10: memref<1x32xf32, #tpu.memory_space<vmem>>, %arg11: memref<8x32xf32, #tpu.memory_space<vmem>>) attributes {dimension_semantics = [#tpu.dimension_semantics<parallel>], iteration_bounds = array<i64: 1>, scalar_prefetch = 0 : i64, scratch_operands = 0 : i64, tpu.core_type = #tpu.core_type<tc>, window_params = [{transform_indices = @transform_0, window_bounds = array<i64: 8, 32>}, {transform_indices = @transform_1, window_bounds = array<i64: 8, 8>}, {transform_indices = @transform_2, window_bounds = array<i64: 8, 8>}, {pipeline_mode = #tpu.pipeline_mode<synchronous>, transform_indices = @transform_3, window_bounds = array<i64: 8, 8>}, {pipeline_mode = #tpu.pipeline_mode<synchronous>, transform_indices = @transform_4, window_bounds = array<i64: 8, 8>}, {pipeline_mode = #tpu.pipeline_mode<synchronous>, transform_indices = @transform_5, window_bounds = array<i64: 1, 8>}, {pipeline_mode = #tpu.pipeline_mode<synchronous>, transform_indices = @transform_6, window_bounds = array<i64: 1, 8>}, {pipeline_mode = #tpu.pipeline_mode<synchronous>, transform_indices = @transform_7, window_bounds = array<i64: 8, 32>}, {pipeline_mode = #tpu.pipeline_mode<synchronous>, transform_indices = @transform_8, window_bounds = array<i64: 1, 32>}, {pipeline_mode = #tpu.pipeline_mode<synchronous>, transform_indices = @transform_9, window_bounds = array<i64: 1, 32>}, {transform_indices = @transform_10, window_bounds = array<i64: 8, 32>}]} {
    %c0 = arith.constant 0 : index
    %c0_0 = arith.constant 0 : index
    %0 = vector.load %arg2[%c0, %c0_0] : memref<8x8xbf16, #tpu.memory_space<vmem>>, vector<8x8xbf16>
    %c0_1 = arith.constant 0 : index
    %c0_2 = arith.constant 0 : index
    %1 = vector.load %arg4[%c0_1, %c0_2] : memref<8x8xbf16, #tpu.memory_space<vmem>>, vector<8x8xbf16>
    %cst = arith.constant dense<0.000000e+00> : vector<8x8xf32>
    %2 = tpu.matmul %0, %1, %cst {dimension_numbers = #tpu.dot_dimension_numbers<[1], [0], [0], [1], [0, 0, 1, 1], [], []>} : vector<8x8xbf16>, vector<8x8xbf16>, vector<8x8xf32> -> vector<8x8xf32>
    %c0_3 = arith.constant 0 : index
    %c0_4 = arith.constant 0 : index
    %3 = vector.load %arg3[%c0_3, %c0_4] : memref<8x8xbf16, #tpu.memory_space<vmem>>, vector<8x8xbf16>
    %c0_5 = arith.constant 0 : index
    %c0_6 = arith.constant 0 : index
    %4 = vector.load %arg5[%c0_5, %c0_6] : memref<8x8xbf16, #tpu.memory_space<vmem>>, vector<8x8xbf16>
    %cst_7 = arith.constant dense<0.000000e+00> : vector<8x8xf32>
    %5 = tpu.matmul %3, %4, %cst_7 {dimension_numbers = #tpu.dot_dimension_numbers<[1], [0], [0], [1], [0, 0, 1, 1], [], []>} : vector<8x8xbf16>, vector<8x8xbf16>, vector<8x8xf32> -> vector<8x8xf32>
    %6 = arith.addf %2, %5 : vector<8x8xf32>
    %c0_8 = arith.constant 0 : index
    %c0_9 = arith.constant 0 : index
    %7 = vector.load %arg6[%c0_8, %c0_9] : memref<1x8xf32, #tpu.memory_space<vmem>>, vector<1x8xf32>
    %c0_10 = arith.constant 0 : index
    %c0_11 = arith.constant 0 : index
    %8 = vector.load %arg7[%c0_10, %c0_11] : memref<1x8xf32, #tpu.memory_space<vmem>>, vector<1x8xf32>
    %9 = vector.broadcast %7 : vector<1x8xf32> to vector<8x8xf32>
    %10 = arith.mulf %6, %9 : vector<8x8xf32>
    %11 = vector.broadcast %8 : vector<1x8xf32> to vector<8x8xf32>
    %12 = arith.addf %10, %11 : vector<8x8xf32>
    %cst_12 = arith.constant 0.000000e+00 : f32
    %13 = vector.broadcast %cst_12 : f32 to vector<8x8xf32>
    %14 = arith.cmpf ogt, %12, %13 : vector<8x8xf32>
    %cst_13 = arith.constant 0.000000e+00 : f32
    %15 = vector.broadcast %cst_13 : f32 to vector<8x8xf32>
    %16 = arith.minimumf %12, %15 : vector<8x8xf32>
    %17 = math.exp %16 : vector<8x8xf32>
    %cst_14 = arith.constant 1.000000e+00 : f32
    %18 = vector.broadcast %cst_14 : f32 to vector<8x8xf32>
    %19 = arith.subf %17, %18 : vector<8x8xf32>
    %20 = arith.select %14, %12, %19 : vector<8x8xi1>, vector<8x8xf32>
    %c0_15 = arith.constant 0 : index
    %c0_16 = arith.constant 0 : index
    %21 = vector.load %arg8[%c0_15, %c0_16] : memref<8x32xbf16, #tpu.memory_space<vmem>>, vector<8x32xbf16>
    %22 = arith.truncf %20 : vector<8x8xf32> to vector<8x8xbf16>
    %cst_17 = arith.constant dense<0.000000e+00> : vector<8x32xf32>
    %23 = tpu.matmul %22, %21, %cst_17 {dimension_numbers = #tpu.dot_dimension_numbers<[1], [0], [0], [1], [0, 0, 1, 1], [], []>} : vector<8x8xbf16>, vector<8x32xbf16>, vector<8x32xf32> -> vector<8x32xf32>
    %c0_18 = arith.constant 0 : index
    %c0_19 = arith.constant 0 : index
    %24 = vector.load %arg9[%c0_18, %c0_19] : memref<1x32xf32, #tpu.memory_space<vmem>>, vector<1x32xf32>
    %c0_20 = arith.constant 0 : index
    %c0_21 = arith.constant 0 : index
    %25 = vector.load %arg10[%c0_20, %c0_21] : memref<1x32xf32, #tpu.memory_space<vmem>>, vector<1x32xf32>
    %c0_22 = arith.constant 0 : index
    %c0_23 = arith.constant 0 : index
    %26 = vector.load %arg1[%c0_22, %c0_23] : memref<8x32xf32, #tpu.memory_space<vmem>>, vector<8x32xf32>
    %27 = vector.broadcast %24 : vector<1x32xf32> to vector<8x32xf32>
    %28 = arith.mulf %23, %27 : vector<8x32xf32>
    %29 = vector.broadcast %25 : vector<1x32xf32> to vector<8x32xf32>
    %30 = arith.addf %28, %29 : vector<8x32xf32>
    %31 = arith.addf %30, %26 : vector<8x32xf32>
    %cst_24 = arith.constant 0.000000e+00 : f32
    %32 = vector.broadcast %cst_24 : f32 to vector<8x32xf32>
    %33 = arith.cmpf ogt, %31, %32 : vector<8x32xf32>
    %cst_25 = arith.constant 0.000000e+00 : f32
    %34 = vector.broadcast %cst_25 : f32 to vector<8x32xf32>
    %35 = arith.minimumf %31, %34 : vector<8x32xf32>
    %36 = math.exp %35 : vector<8x32xf32>
    %cst_26 = arith.constant 1.000000e+00 : f32
    %37 = vector.broadcast %cst_26 : f32 to vector<8x32xf32>
    %38 = arith.subf %36, %37 : vector<8x32xf32>
    %39 = arith.select %33, %31, %38 : vector<8x32xi1>, vector<8x32xf32>
    %c0_27 = arith.constant 0 : index
    %c0_28 = arith.constant 0 : index
    %40 = vector.load %arg11[%c0_27, %c0_28] : memref<8x32xf32, #tpu.memory_space<vmem>>, vector<8x32xf32>
    tpu.vector_store %arg11[%c0_27, %c0_28], %39 {strides = array<i32>} : memref<8x32xf32, #tpu.memory_space<vmem>>, vector<8x32xf32>,
    return
  }
  func.func @transform_0(%arg0: i32) -> (i32, i32) {
    %c0_i32 = arith.constant 0 : i32
    %c0_i32_0 = arith.constant 0 : i32
    return %arg0, %c0_i32 : i32, i32
  }
  func.func @transform_1(%arg0: i32) -> (i32, i32) {
    %c0_i32 = arith.constant 0 : i32
    %c0_i32_0 = arith.constant 0 : i32
    return %arg0, %c0_i32 : i32, i32
  }
  func.func @transform_2(%arg0: i32) -> (i32, i32) {
    %c0_i32 = arith.constant 0 : i32
    %c0_i32_0 = arith.constant 0 : i32
    return %arg0, %c0_i32 : i32, i32
  }
  func.func @transform_3(%arg0: i32) -> (i32, i32) {
    %c0_i32 = arith.constant 0 : i32
    %c0_i32_0 = arith.constant 0 : i32
    %c0_i32_1 = arith.constant 0 : i32
    return %c0_i32, %c0_i32_0 : i32, i32
  }
  func.func @transform_4(%arg0: i32) -> (i32, i32) {
    %c0_i32 = arith.constant 0 : i32
    %c0_i32_0 = arith.constant 0 : i32
    %c0_i32_1 = arith.constant 0 : i32
    return %c0_i32, %c0_i32_0 : i32, i32
  }
  func.func @transform_5(%arg0: i32) -> (i32, i32) {
    %c0_i32 = arith.constant 0 : i32
    %c0_i32_0 = arith.constant 0 : i32
    %c0_i32_1 = arith.constant 0 : i32
    return %c0_i32, %c0_i32_0 : i32, i32
  }
  func.func @transform_6(%arg0: i32) -> (i32, i32) {
    %c0_i32 = arith.constant 0 : i32
    %c0_i32_0 = arith.constant 0 : i32
    %c0_i32_1 = arith.constant 0 : i32
    return %c0_i32, %c0_i32_0 : i32, i32
  }
  func.func @transform_7(%arg0: i32) -> (i32, i32) {
    %c0_i32 = arith.constant 0 : i32
    %c0_i32_0 = arith.constant 0 : i32
    %c0_i32_1 = arith.constant 0 : i32
    return %c0_i32, %c0_i32_0 : i32, i32
  }
  func.func @transform_8(%arg0: i32) -> (i32, i32) {
    %c0_i32 = arith.constant 0 : i32
    %c0_i32_0 = arith.constant 0 : i32
    %c0_i32_1 = arith.constant 0 : i32
    return %c0_i32, %c0_i32_0 : i32, i32
  }
  func.func @transform_9(%arg0: i32) -> (i32, i32) {
    %c0_i32 = arith.constant 0 : i32
    %c0_i32_0 = arith.constant 0 : i32
    %c0_i32_1 = arith.constant 0 : i32
    return %c0_i32, %c0_i32_0 : i32, i32
  }
  func.func @transform_10(%arg0: i32) -> (i32, i32) {
    %c0_i32 = arith.constant 0 : i32
    %c0_i32_0 = arith.constant 0 : i32
    return %arg0, %c0_i32 : i32, i32
  }
}

</mosaic_0001>

<llo_original>
// kernel: resblock_forward.4
$region0: #{resblock_forward.4}
  #allocation0 [shape = 'u32[]', space=smem, size = 0x4, offset = 0x4, fixed_abs, tag = 'smem constant byte address 0x4 - core index']
  #allocation1 [shape = 'u32[72,128]{1,0:T(1,128)}', space=vmem, size = 0x9000, scoped, tag = 'internal scratch']
  %s0 = inlined_call_operand.vmem [shape: f32[8,32], index: 0, kind: input, shape index: {}]
  %s1 = inlined_call_operand.vmem [shape: bf16[32,8], index: 1, kind: input, shape index: {}]
  %s2 = inlined_call_operand.vmem [shape: f32[1,8], index: 2, kind: input, shape index: {}]
  %s3 = inlined_call_operand.vmem [shape: f32[1,8], index: 3, kind: input, shape index: {}]
  %s4 = inlined_call_operand.vmem [shape: bf16[8,8], index: 4, kind: output, shape index: {}]
  %s5 = sld [smem:[#allocation0]]
  $region26: #{resblock_forward.4} parent=0
    _
  %s7 = ssub.s32 1, %s5
  %s8 = scalar_select 0, %s7, %s5
  // Predicated region
  $region2: #{resblock_forward.4} parent=0 // pred_check
    _
  $region3: #{resblock_forward.4} parent=0 // pred_check_branch
    %10 = sbr.rel (0) target = $region5
  $region4: #{resblock_forward.4} parent=0 // pred_region
    _
  $region5: #{resblock_forward.4} parent=0 // pred_fallthru
    _
  // Predicated region
  $region6: #{resblock_forward.4} parent=0 // pred_check
    _
  $region7: #{resblock_forward.4} parent=0 // pred_check_branch
    %12 = sbr.rel (0) target = $region9
  $region8: #{resblock_forward.4} parent=0 // pred_region
    _
  $region9: #{resblock_forward.4} parent=0 // pred_fallthru
    _
  // Predicated region
  $region10: #{resblock_forward.4} parent=0 // pred_check
    _
  $region11: #{resblock_forward.4} parent=0 // pred_check_branch
    %14 = sbr.rel (0) target = $region13
  $region12: #{resblock_forward.4} parent=0 // pred_region
    _
  $region13: #{resblock_forward.4} parent=0 // pred_fallthru
    _
  // Predicated region
  $region14: #{resblock_forward.4} parent=0 // pred_check
    _
  $region15: #{resblock_forward.4} parent=0 // pred_check_branch
    %16 = sbr.rel (0) target = $region17
  $region16: #{resblock_forward.4} parent=0 // pred_region
    _
  $region17: #{resblock_forward.4} parent=0 // pred_fallthru
    _
  %v18 = vld [vmem:[%s0] sm:$0xff]
  %v19 = vld [vmem:[%s1] sm:$0xf]
  %v20 = vld [vmem:[%s1 + $0x4] sm:$0xf]
  %v21 = vld [vmem:[%s1 + $0x8] sm:$0xf]
  %v22 = vld [vmem:[%s1 + $0xc] sm:$0xf]
  %v23 = vpack.c.bf16 %v18, %v18
  %v28 = vunpack.c.l.b16 %v19
  %v29 = vunpack.c.l.b16 %v20
  %v30 = vunpack.c.l.b16 %v21
  %v31 = vunpack.c.l.b16 %v22
  %v32 = vpack.c.b16 %v29, %v28
  %v33 = vpack.c.b16 %v31, %v30
  %vm36 = vcmask 261120
  %v38 = vsel %vm36, %v23, 0
  %40 = vmatpush.bf16.msra.mxu0 0
  %41 = vmatpush.bf16.msra.mxu0 0
  %42 = vmatpush.bf16.msra.mxu0 0
  %43 = vmatpush.bf16.msra.mxu0 0
  %44 = vmatpush.bf16.msra.mxu0 0
  %45 = vmatpush.bf16.msra.mxu0 0
  %46 = vmatpush.bf16.msra.mxu0 %v33
  %47 = vmatpush.bf16.msra.mxu0 %v32
  %48 = vmatmul.bf16.gmra.mxu0 %v38
  %v49 = vpop.f32.mrf.mxu0
  %v50 = vadd.f32 0.0, %v49
  %v51 = vpop.f32.mrf.mxu0
  %52 = vdwg.mxu0
  %v53 = vld [vmem:[%s2] sm:$0x1]
  %v54 = vld [vmem:[%s3] sm:$0x1]
  %v56 = vperm.slane %v53, 0
  %v58 = vmul.f32 %v50, %v56
  %v60 = vperm.slane %v54, 0
  %v62 = vadd.f32 %v58, %v60
  %vm63 = vcmp.gt.f32.partialorder %v62, 0.0
  %v64 = vmin.f32 %v62, 0.0
  %v65 = vmul.f32 %v64, 1.442695
  %v66 = vpow.pop %v65
  %v67 = vsub.f32 %v66, 1.0
  %v68 = vsel %vm63, %v62, %v67
  %v69 = vpack.c.bf16 %v68, %v68
  %vm70 = vcmask 60416
  %71 = vst.msk [vmem:[%s4] sm:$0xf] %vm70, %v69
  // Predicated region
  $region18: #{resblock_forward.4} parent=0 // pred_check
    _
  $region19: #{resblock_forward.4} parent=0 // pred_check_branch
    %73 = sbr.rel (0) target = $region21
  $region20: #{resblock_forward.4} parent=0 // pred_region
    _
  $region21: #{resblock_forward.4} parent=0 // pred_fallthru
    _
  // Predicated region
  $region22: #{resblock_forward.4} parent=0 // pred_check
    _
  $region23: #{resblock_forward.4} parent=0 // pred_check_branch
    %75 = sbr.rel (0) target = $region25
  $region24: #{resblock_forward.4} parent=0 // pred_region
    _
  $region25: #{resblock_forward.4} parent=0 // pred_fallthru
    _

// kernel: resblock_forward.6
$region0: #{resblock_forward.6}
  #allocation0 [shape = 'u32[]', space=smem, size = 0x4, offset = 0x4, fixed_abs, tag = 'smem constant byte address 0x4 - core index']
  #allocation1 [shape = 'u32[72,128]{1,0:T(1,128)}', space=vmem, size = 0x9000, scoped, tag = 'internal scratch']
  #allocation2 [shape = 'f32[8,8]{1,0:T(8,128)}', space=vmem, size = 0x1000, scoped, tag = 'scratch operand']
  #allocation3 [shape = 'f32[8,1]{1,0:T(8,128)}', space=vmem, size = 0x1000, scoped, tag = 'scratch operand']
  %s0 = inlined_call_operand.vmem [shape: s32[1,16], index: 0, kind: input, shape index: {}]
  %s1 = inlined_call_operand.vmem [shape: bf16[16,8], index: 1, kind: input, shape index: {}]
  %s2 = inlined_call_operand.vmem [shape: bf16[8,8], index: 2, kind: output, shape index: {}]
  %s3 = sld [smem:[#allocation0]]
  $region26: #{resblock_forward.6} parent=0
    _
  %s5 = ssub.s32 1, %s3
  %s6 = scalar_select 0, %s5, %s3
  // Predicated region
  $region2: #{resblock_forward.6} parent=0 // pred_check
    _
  $region3: #{resblock_forward.6} parent=0 // pred_check_branch
    %8 = sbr.rel (0) target = $region5
  $region4: #{resblock_forward.6} parent=0 // pred_region
    _
  $region5: #{resblock_forward.6} parent=0 // pred_fallthru
    _
  // Predicated region
  $region6: #{resblock_forward.6} parent=0 // pred_check
    _
  $region7: #{resblock_forward.6} parent=0 // pred_check_branch
    %10 = sbr.rel (0) target = $region9
  $region8: #{resblock_forward.6} parent=0 // pred_region
    _
  $region9: #{resblock_forward.6} parent=0 // pred_fallthru
    _
  %p12 = scmp.eq.s32.totalorder 0, 0
  // Predicated region
  $region10: #{resblock_forward.6} parent=0 // pred_check
    %p13 = pneg %p12
  $region11: #{resblock_forward.6} parent=0 // pred_check_branch
    %15 = sbr.rel (%p13) target = $region13
  $region12: #{resblock_forward.6} parent=0 // pred_region
    %vm16 = vcmask 64512
    %17 = vst.msk [vmem:[#allocation2] sm:$0xff] %vm16, 0.0
    %vm18 = vcmask 7168
    %19 = vst.msk [vmem:[#allocation3] sm:$0xff] %vm18, 0.0
  $region13: #{resblock_forward.6} parent=0 // pred_fallthru
    _
  %s20 = smul.u32 0, 8
  %v21 = vlaneseq
  %v22 = vshrl.u32 %v21, 7
  %v23 = vstv %s20
  %v24 = vadd.s32 %v22, %v23
  %v25 = vld [vmem:[%s0] sm:$0x1]
  %v26 = vperm.slane %v25, 0
  %vm27 = vcmp.eq.s32.totalorder %v24, %v26
  %v28 = vsel %vm27, 1, 0
  %v29 = vcvt.s32.f32 %v28
  %v30 = vpack.c.bf16 %v29, %v29
  %v31 = vld [vmem:[#allocation2] sm:$0xff]
  %v32 = vld [vmem:[%s1] sm:$0xf]
  %v33 = vld [vmem:[%s1 + $0x4] sm:$0xf]
  %v36 = vunpack.c.l.b16 %v32
  %v37 = vunpack.c.l.b16 %v33
  %v38 = vpack.c.b16 %v37, %v36
  %vm40 = vcmask 130048
  %v42 = vsel %vm40, %v30, 0
  %44 = vmatpush.bf16.msra.mxu0 0
  %45 = vmatpush.bf16.msra.mxu0 0
  %46 = vmatpush.bf16.msra.mxu0 0
  %47 = vmatpush.bf16.msra.mxu0 0
  %48 = vmatpush.bf16.msra.mxu0 0
  %49 = vmatpush.bf16.msra.mxu0 0
  %50 = vmatpush.bf16.msra.mxu0 0
  %51 = vmatpush.bf16.msra.mxu0 %v38
  %52 = vmatmul.bf16.gmra.mxu0 %v42
  %v53 = vpop.f32.mrf.mxu0
  %v54 = vadd.f32 0.0, %v53
  %v55 = vpop.f32.mrf.mxu0
  %56 = vdwg.mxu0
  %v57 = vadd.f32 %v31, %v54
  %vm58 = vcmask 64512
  %59 = vst.msk [vmem:[#allocation2] sm:$0xff] %vm58, %v57
  %v60 = vld [vmem:[#allocation3] sm:$0xff]
  %v61 = vunpack.c.l.bf16 %v30
  %v62 = vsel %vm40, %v61, 0.0
  %63 = vadd.xlane.f32.xlu0 %v62
  %v64 = vpop.xlane.xlu0 %63
  %v65 = vadd.f32 %v60, %v64
  %vm66 = vcmask 7168
  %67 = vst.msk [vmem:[#allocation3] sm:$0xff] %vm66, %v65
  // Predicated region
  $region14: #{resblock_forward.6} parent=0 // pred_check
    %p68 = pneg %p12
  $region15: #{resblock_forward.6} parent=0 // pred_check_branch
    %70 = sbr.rel (%p68) target = $region17
  $region16: #{resblock_forward.6} parent=0 // pred_region
    %v71 = vld [vmem:[#allocation3] sm:$0xff]
    %v72 = vmax.f32 %v71, 1.0
    %v73 = vrcp.pop %v72
    %v74 = vmul.f32 %v72, %v73
    %v75 = vsub.f32 1.0, %v74
    %v76 = vmul.f32 %v73, %v75
    %v77 = vadd.f32 %v73, %v76
    %vm78 = vweird.f32 %v72
    %vm79 = vweird.f32 %v73
    %vm80 = vmor %vm78, %vm79
    %v81 = vsel %vm80, %v73, %v77
    %v82 = vand.u32 2147483647, %v72
    %vm83 = vcmp.eq.f32.partialorder %v82, 8.507059e+37
    %v84 = vand.u32 %v72, 2147483648
    %v85 = vor.u32 1.1754944e-38, %v84
    %v86 = vsel %vm83, %v85, %v81
    %v87 = vld [vmem:[#allocation2] sm:$0xff]
    %89 = vset.pattern.permute.xlu0 0
    %90 = vperm.xlu0 %89, %v86
    %v91 = vpop.permute.xlu0 %90
    %v93 = vmul.f32 %v87, %v91
    %v94 = vpack.c.bf16 %v93, %v93
    %vm95 = vcmask 60416
    %96 = vst.msk [vmem:[%s2] sm:$0xf] %vm95, %v94
  $region17: #{resblock_forward.6} parent=0 // pred_fallthru
    _
  // Predicated region
  $region18: #{resblock_forward.6} parent=0 // pred_check
    _
  $region19: #{resblock_forward.6} parent=0 // pred_check_branch
    %98 = sbr.rel (0) target = $region21
  $region20: #{resblock_forward.6} parent=0 // pred_region
    _
  $region21: #{resblock_forward.6} parent=0 // pred_fallthru
    _
  // Predicated region
  $region22: #{resblock_forward.6} parent=0 // pred_check
    _
  $region23: #{resblock_forward.6} parent=0 // pred_check_branch
    %100 = sbr.rel (0) target = $region25
  $region24: #{resblock_forward.6} parent=0 // pred_region
    _
  $region25: #{resblock_forward.6} parent=0 // pred_fallthru
    _

// kernel: resblock_forward.7
$region0: #{resblock_forward.7}
  #allocation0 [shape = 'u32[]', space=smem, size = 0x4, offset = 0x4, fixed_abs, tag = 'smem constant byte address 0x4 - core index']
  #allocation1 [shape = 'u32[72,128]{1,0:T(1,128)}', space=vmem, size = 0x9000, scoped, tag = 'internal scratch']
  %s0 = inlined_call_operand.vmem [shape: f32[8,32], index: 0, kind: input, shape index: {}]
  %s1 = inlined_call_operand.vmem [shape: bf16[8,8], index: 1, kind: input, shape index: {}]
  %s2 = inlined_call_operand.vmem [shape: bf16[8,8], index: 2, kind: input, shape index: {}]
  %s3 = inlined_call_operand.vmem [shape: bf16[8,8], index: 3, kind: input, shape index: {}]
  %s4 = inlined_call_operand.vmem [shape: bf16[8,8], index: 4, kind: input, shape index: {}]
  %s5 = inlined_call_operand.vmem [shape: f32[1,8], index: 5, kind: input, shape index: {}]
  %s6 = inlined_call_operand.vmem [shape: f32[1,8], index: 6, kind: input, shape index: {}]
  %s7 = inlined_call_operand.vmem [shape: bf16[8,32], index: 7, kind: input, shape index: {}]
  %s8 = inlined_call_operand.vmem [shape: f32[1,32], index: 8, kind: input, shape index: {}]
  %s9 = inlined_call_operand.vmem [shape: f32[1,32], index: 9, kind: input, shape index: {}]
  %s10 = inlined_call_operand.hbm [shape: f32[8,32], index: 10, kind: output, shape index: {}]
  %s11 = sld [smem:[#allocation0]]
  $region50: #{resblock_forward.7} parent=0
    _
  %s13 = ssub.s32 1, %s11
  %s14 = scalar_select 0, %s13, %s11
  $region1: #{resblock_forward.7} parent=0
    #allocation2 [shape = 'u8[4096]{0}', space=vmem, size = 0x1000, scoped, tag = 'output window, operand 0, single buffered']
    #allocation3 [shape = 's32[1]{0}', space=sflag, size = 0x4, scoped, tag = 'scoped memory for resblock_forward.7']
    %15 = vsyncpa [#allocation3], 0
    // Predicated region
    $region2: #{resblock_forward.7} parent=1 // pred_check
      _
    $region3: #{resblock_forward.7} parent=1 // pred_check_branch
      %17 = sbr.rel (0) target = $region5
    $region4: #{resblock_forward.7} parent=1 // pred_region
      _
    $region5: #{resblock_forward.7} parent=1 // pred_fallthru
      _
    // Predicated region
    $region6: #{resblock_forward.7} parent=1 // pred_check
      _
    $region7: #{resblock_forward.7} parent=1 // pred_check_branch
      %19 = sbr.rel (0) target = $region9
    $region8: #{resblock_forward.7} parent=1 // pred_region
      _
    $region9: #{resblock_forward.7} parent=1 // pred_fallthru
      _
    // Predicated region
    $region10: #{resblock_forward.7} parent=1 // pred_check
      _
    $region11: #{resblock_forward.7} parent=1 // pred_check_branch
      %21 = sbr.rel (0) target = $region13
    $region12: #{resblock_forward.7} parent=1 // pred_region
      _
    $region13: #{resblock_forward.7} parent=1 // pred_fallthru
      _
    // Predicated region
    $region14: #{resblock_forward.7} parent=1 // pred_check
      _
    $region15: #{resblock_forward.7} parent=1 // pred_check_branch
      %23 = sbr.rel (0) target = $region17
    $region16: #{resblock_forward.7} parent=1 // pred_region
      _
    $region17: #{resblock_forward.7} parent=1 // pred_fallthru
      _
    // Predicated region
    $region18: #{resblock_forward.7} parent=1 // pred_check
      _
    $region19: #{resblock_forward.7} parent=1 // pred_check_branch
      %25 = sbr.rel (0) target = $region21
    $region20: #{resblock_forward.7} parent=1 // pred_region
      _
    $region21: #{resblock_forward.7} parent=1 // pred_fallthru
      _
    // Predicated region
    $region22: #{resblock_forward.7} parent=1 // pred_check
      _
    $region23: #{resblock_forward.7} parent=1 // pred_check_branch
      %27 = sbr.rel (0) target = $region25
    $region24: #{resblock_forward.7} parent=1 // pred_region
      _
    $region25: #{resblock_forward.7} parent=1 // pred_fallthru
      _
    // Predicated region
    $region26: #{resblock_forward.7} parent=1 // pred_check
      _
    $region27: #{resblock_forward.7} parent=1 // pred_check_branch
      %29 = sbr.rel (0) target = $region29
    $region28: #{resblock_forward.7} parent=1 // pred_region
      _
    $region29: #{resblock_forward.7} parent=1 // pred_fallthru
      _
    // Predicated region
    $region30: #{resblock_forward.7} parent=1 // pred_check
      _
    $region31: #{resblock_forward.7} parent=1 // pred_check_branch
      %31 = sbr.rel (0) target = $region33
    $region32: #{resblock_forward.7} parent=1 // pred_region
      _
    $region33: #{resblock_forward.7} parent=1 // pred_fallthru
      _
    // Predicated region
    $region34: #{resblock_forward.7} parent=1 // pred_check
      _
    $region35: #{resblock_forward.7} parent=1 // pred_check_branch
      %33 = sbr.rel (0) target = $region37
    $region36: #{resblock_forward.7} parent=1 // pred_region
      _
    $region37: #{resblock_forward.7} parent=1 // pred_fallthru
      _
    // Predicated region
    $region38: #{resblock_forward.7} parent=1 // pred_check
      _
    $region39: #{resblock_forward.7} parent=1 // pred_check_branch
      %35 = sbr.rel (0) target = $region41
    $region40: #{resblock_forward.7} parent=1 // pred_region
      _
    $region41: #{resblock_forward.7} parent=1 // pred_fallthru
      _
    %v37 = vld [vmem:[%s1] sm:$0xf]
    %v38 = vld [vmem:[%s3] sm:$0xf]
    %v39 = vld [vmem:[%s2] sm:$0xf]
    %v40 = vld [vmem:[%s4] sm:$0xf]
    %vm41 = vcmask 64512
    %v43 = vsel %vm41, %v39, 0
    %vm45 = vcmask 1043456
    %v47 = vsel %vm45, %v40, 0
    %49 = vmatpush.bf16.msra.mxu0 0
    %50 = vmatpush.bf16.msra.mxu0 0
    %51 = vmatpush.bf16.msra.mxu0 0
    %52 = vmatpush.bf16.msra.mxu0 0
    %53 = vmatpush.bf16.msra.mxu0 0
    %54 = vmatpush.bf16.msra.mxu0 0
    %55 = vmatpush.bf16.msra.mxu0 0
    %56 = vmatpush.bf16.msra.mxu0 %v47
    %57 = vmatmul.bf16.gmra.mxu0 %v43
    %v58 = vpop.f32.mrf.mxu0
    %v59 = vadd.f32 0.0, %v58
    %v60 = vpop.f32.mrf.mxu0
    %61 = vdwg.mxu0
    %v63 = vsel %vm41, %v37, 0
    %v66 = vsel %vm45, %v38, 0
    %68 = vmatpush.bf16.msra.mxu0 0
    %69 = vmatpush.bf16.msra.mxu0 0
    %70 = vmatpush.bf16.msra.mxu0 0
    %71 = vmatpush.bf16.msra.mxu0 0
    %72 = vmatpush.bf16.msra.mxu0 0
    %73 = vmatpush.bf16.msra.mxu0 0
    %74 = vmatpush.bf16.msra.mxu0 0
    %75 = vmatpush.bf16.msra.mxu0 %v66
    %76 = vmatmul.bf16.gmra.mxu0 %v63
    %v77 = vpop.f32.mrf.mxu0
    %v78 = vadd.f32 %v59, %v77
    %v79 = vpop.f32.mrf.mxu0
    %80 = vdwg.mxu0
    %v81 = vld [vmem:[%s5] sm:$0x1]
    %v82 = vld [vmem:[%s6] sm:$0x1]
    %v84 = vperm.slane %v81, 0
    %v86 = vmul.f32 %v78, %v84
    %v88 = vperm.slane %v82, 0
    %v90 = vadd.f32 %v86, %v88
    %vm91 = vcmp.gt.f32.partialorder %v90, 0.0
    %v92 = vmin.f32 %v90, 0.0
    %v93 = vmul.f32 %v92, 1.442695
    %v94 = vpow.pop %v93
    %v95 = vsub.f32 %v94, 1.0
    %v96 = vsel %vm91, %v90, %v95
    %v97 = vld [vmem:[%s7] sm:$0xf]
    %v98 = vpack.c.bf16 %v96, %v96
    %v100 = vsel %vm41, %v98, 0
    %v103 = vsel %vm45, %v97, 0
    %105 = vmatpush.bf16.msra.mxu0 0
    %106 = vmatpush.bf16.msra.mxu0 0
    %107 = vmatpush.bf16.msra.mxu0 0
    %108 = vmatpush.bf16.msra.mxu0 0
    %109 = vmatpush.bf16.msra.mxu0 0
    %110 = vmatpush.bf16.msra.mxu0 0
    %111 = vmatpush.bf16.msra.mxu0 0
    %112 = vmatpush.bf16.msra.mxu0 %v103
    %113 = vmatmul.bf16.gmra.mxu0 %v100
    %v114 = vpop.f32.mrf.mxu0
    %v115 = vadd.f32 0.0, %v114
    %v116 = vpop.f32.mrf.mxu0
    %117 = vdwg.mxu0
    %v118 = vld [vmem:[%s8] sm:$0x1]
    %v119 = vld [vmem:[%s9] sm:$0x1]
    %v120 = vld [vmem:[%s0] sm:$0xff]
    %v122 = vperm.slane %v118, 0
    %v124 = vmul.f32 %v115, %v122
    %v126 = vperm.slane %v119, 0
    %v128 = vadd.f32 %v124, %v126
    %v129 = vadd.f32 %v128, %v120
    %vm130 = vcmp.gt.f32.partialorder %v129, 0.0
    %v131 = vmin.f32 %v129, 0.0
    %v132 = vmul.f32 %v131, 1.442695
    %v133 = vpow.pop %v132
    %v134 = vsub.f32 %v133, 1.0
    %v135 = vsel %vm130, %v129, %v134
    %vm136 = vcmask 261120
    %137 = vst.msk [vmem:[#allocation2] sm:$0xff] %vm136, %v135
    // Predicated region
    $region42: #{resblock_forward.7} parent=1 // pred_check
      _
    $region43: #{resblock_forward.7} parent=1 // pred_check_branch
      %139 = sbr.rel (0) target = $region45
    $region44: #{resblock_forward.7} parent=1 // pred_region
      %141 = vsyncadd [#allocation3], 0
      %s143 = sshll.u32 [#allocation2], 4
      %s144 = int_to_ptr.vmem [resolvable:$true] %s143
      %s145 = sshll.u32 %s10, 4
      %s146 = int_to_ptr.hbm [resolvable:$true] %s145
      %148 = dma.vmem_to_hbm [thread:$0]  %s144, 128, %s146, [#allocation3]
    $region45: #{resblock_forward.7} parent=1 // pred_fallthru
      _
    // Predicated region
    $region46: #{resblock_forward.7} parent=1 // pred_check
      _
    $region47: #{resblock_forward.7} parent=1 // pred_check_branch
      %150 = sbr.rel (0) target = $region49
    $region48: #{resblock_forward.7} parent=1 // pred_region
      %152 = dma.done [#allocation3], 128
    $region49: #{resblock_forward.7} parent=1 // pred_fallthru
      _
    %153 = vsyncpa [#allocation3], 1

// kernel: resblock_forward.5
$region0: #{resblock_forward.5}
  #allocation0 [shape = 'u32[]', space=smem, size = 0x4, offset = 0x4, fixed_abs, tag = 'smem constant byte address 0x4 - core index']
  #allocation1 [shape = 'u32[72,128]{1,0:T(1,128)}', space=vmem, size = 0x9000, scoped, tag = 'internal scratch']
  %s0 = inlined_call_operand.vmem [shape: f32[16,32], index: 0, kind: input, shape index: {}]
  %s1 = inlined_call_operand.vmem [shape: bf16[16,8], index: 1, kind: input, shape index: {}]
  %s2 = inlined_call_operand.vmem [shape: bf16[16,8], index: 2, kind: input, shape index: {}]
  %s3 = inlined_call_operand.vmem [shape: bf16[32,8], index: 3, kind: input, shape index: {}]
  %s4 = inlined_call_operand.vmem [shape: f32[1,8], index: 4, kind: input, shape index: {}]
  %s5 = inlined_call_operand.vmem [shape: f32[1,8], index: 5, kind: input, shape index: {}]
  %s6 = inlined_call_operand.vmem [shape: bf16[8,8], index: 6, kind: input, shape index: {}]
  %s7 = inlined_call_operand.vmem [shape: bf16[8,8], index: 7, kind: input, shape index: {}]
  %s8 = inlined_call_operand.vmem [shape: bf16[8,8], index: 8, kind: input, shape index: {}]
  %s9 = inlined_call_operand.vmem [shape: f32[1,8], index: 9, kind: input, shape index: {}]
  %s10 = inlined_call_operand.vmem [shape: f32[1,8], index: 10, kind: input, shape index: {}]
  %s11 = inlined_call_operand.vmem [shape: bf16[8,8], index: 11, kind: input, shape index: {}]
  %s12 = inlined_call_operand.vmem [shape: bf16[8,8], index: 12, kind: input, shape index: {}]
  %s13 = inlined_call_operand.vmem [shape: f32[1,8], index: 13, kind: input, shape index: {}]
  %s14 = inlined_call_operand.vmem [shape: f32[1,8], index: 14, kind: input, shape index: {}]
  %s15 = inlined_call_operand.vmem [shape: bf16[8,32], index: 15, kind: input, shape index: {}]
  %s16 = inlined_call_operand.vmem [shape: f32[1,32], index: 16, kind: input, shape index: {}]
  %s17 = inlined_call_operand.vmem [shape: f32[1,32], index: 17, kind: input, shape index: {}]
  %s18 = inlined_call_operand.hbm [shape: f32[16,32], index: 18, kind: output, shape index: {0}]
  %s19 = inlined_call_operand.vmem [shape: bf16[16,8], index: 19, kind: output, shape index: {1}]
  %20 = xla_tuple %s18, %s19
  %s21 = sld [smem:[#allocation0]]
  $region90: #{resblock_forward.5} parent=0
    _
  %s23 = ssub.s32 1, %s21
  %s24 = scalar_select 0, %s23, %s21
  $region1: #{resblock_forward.5} parent=0
    #allocation2 [shape = 'u8[8192]{0}', space=vmem, size = 0x2000, scoped, tag = 'output window, operand 0, single buffered']
    #allocation3 [shape = 's32[1]{0}', space=sflag, size = 0x4, scoped, tag = 'scoped memory for resblock_forward.5']
    %25 = vsyncpa [#allocation3], 0
    // Predicated region
    $region2: #{resblock_forward.5} parent=1 // pred_check
      _
    $region3: #{resblock_forward.5} parent=1 // pred_check_branch
      %27 = sbr.rel (0) target = $region5
    $region4: #{resblock_forward.5} parent=1 // pred_region
      _
    $region5: #{resblock_forward.5} parent=1 // pred_fallthru
      _
    // Predicated region
    $region6: #{resblock_forward.5} parent=1 // pred_check
      _
    $region7: #{resblock_forward.5} parent=1 // pred_check_branch
      %29 = sbr.rel (0) target = $region9
    $region8: #{resblock_forward.5} parent=1 // pred_region
      _
    $region9: #{resblock_forward.5} parent=1 // pred_fallthru
      _
    // Predicated region
    $region10: #{resblock_forward.5} parent=1 // pred_check
      _
    $region11: #{resblock_forward.5} parent=1 // pred_check_branch
      %31 = sbr.rel (0) target = $region13
    $region12: #{resblock_forward.5} parent=1 // pred_region
      _
    $region13: #{resblock_forward.5} parent=1 // pred_fallthru
      _
    // Predicated region
    $region14: #{resblock_forward.5} parent=1 // pred_check
      _
    $region15: #{resblock_forward.5} parent=1 // pred_check_branch
      %33 = sbr.rel (0) target = $region17
    $region16: #{resblock_forward.5} parent=1 // pred_region
      _
    $region17: #{resblock_forward.5} parent=1 // pred_fallthru
      _
    // Predicated region
    $region18: #{resblock_forward.5} parent=1 // pred_check
      _
    $region19: #{resblock_forward.5} parent=1 // pred_check_branch
      %35 = sbr.rel (0) target = $region21
    $region20: #{resblock_forward.5} parent=1 // pred_region
      _
    $region21: #{resblock_forward.5} parent=1 // pred_fallthru
      _
    // Predicated region
    $region22: #{resblock_forward.5} parent=1 // pred_check
      _
    $region23: #{resblock_forward.5} parent=1 // pred_check_branch
      %37 = sbr.rel (0) target = $region25
    $region24: #{resblock_forward.5} parent=1 // pred_region
      _
    $region25: #{resblock_forward.5} parent=1 // pred_fallthru
      _
    // Predicated region
    $region26: #{resblock_forward.5} parent=1 // pred_check
      _
    $region27: #{resblock_forward.5} parent=1 // pred_check_branch
      %39 = sbr.rel (0) target = $region29
    $region28: #{resblock_forward.5} parent=1 // pred_region
      _
    $region29: #{resblock_forward.5} parent=1 // pred_fallthru
      _
    // Predicated region
    $region30: #{resblock_forward.5} parent=1 // pred_check
      _
    $region31: #{resblock_forward.5} parent=1 // pred_check_branch
      %41 = sbr.rel (0) target = $region33
    $region32: #{resblock_forward.5} parent=1 // pred_region
      _
    $region33: #{resblock_forward.5} parent=1 // pred_fallthru
      _
    // Predicated region
    $region34: #{resblock_forward.5} parent=1 // pred_check
      _
    $region35: #{resblock_forward.5} parent=1 // pred_check_branch
      %43 = sbr.rel (0) target = $region37
    $region36: #{resblock_forward.5} parent=1 // pred_region
      _
    $region37: #{resblock_forward.5} parent=1 // pred_fallthru
      _
    // Predicated region
    $region38: #{resblock_forward.5} parent=1 // pred_check
      _
    $region39: #{resblock_forward.5} parent=1 // pred_check_branch
      %45 = sbr.rel (0) target = $region41
    $region40: #{resblock_forward.5} parent=1 // pred_region
      _
    $region41: #{resblock_forward.5} parent=1 // pred_fallthru
      _
    // Predicated region
    $region42: #{resblock_forward.5} parent=1 // pred_check
      _
    $region43: #{resblock_forward.5} parent=1 // pred_check_branch
      %47 = sbr.rel (0) target = $region45
    $region44: #{resblock_forward.5} parent=1 // pred_region
      _
    $region45: #{resblock_forward.5} parent=1 // pred_fallthru
      _
    // Predicated region
    $region46: #{resblock_forward.5} parent=1 // pred_check
      _
    $region47: #{resblock_forward.5} parent=1 // pred_check_branch
      %49 = sbr.rel (0) target = $region49
    $region48: #{resblock_forward.5} parent=1 // pred_region
      _
    $region49: #{resblock_forward.5} parent=1 // pred_fallthru
      _
    // Predicated region
    $region50: #{resblock_forward.5} parent=1 // pred_check
      _
    $region51: #{resblock_forward.5} parent=1 // pred_check_branch
      %51 = sbr.rel (0) target = $region53
    $region52: #{resblock_forward.5} parent=1 // pred_region
      _
    $region53: #{resblock_forward.5} parent=1 // pred_fallthru
      _
    // Predicated region
    $region54: #{resblock_forward.5} parent=1 // pred_check
      _
    $region55: #{resblock_forward.5} parent=1 // pred_check_branch
      %53 = sbr.rel (0) target = $region57
    $region56: #{resblock_forward.5} parent=1 // pred_region
      _
    $region57: #{resblock_forward.5} parent=1 // pred_fallthru
      _
    // Predicated region
    $region58: #{resblock_forward.5} parent=1 // pred_check
      _
    $region59: #{resblock_forward.5} parent=1 // pred_check_branch
      %55 = sbr.rel (0) target = $region61
    $region60: #{resblock_forward.5} parent=1 // pred_region
      _
    $region61: #{resblock_forward.5} parent=1 // pred_fallthru
      _
    // Predicated region
    $region62: #{resblock_forward.5} parent=1 // pred_check
      _
    $region63: #{resblock_forward.5} parent=1 // pred_check_branch
      %57 = sbr.rel (0) target = $region65
    $region64: #{resblock_forward.5} parent=1 // pred_region
      _
    $region65: #{resblock_forward.5} parent=1 // pred_fallthru
      _
    // Predicated region
    $region66: #{resblock_forward.5} parent=1 // pred_check
      _
    $region67: #{resblock_forward.5} parent=1 // pred_check_branch
      %59 = sbr.rel (0) target = $region69
    $region68: #{resblock_forward.5} parent=1 // pred_region
      _
    $region69: #{resblock_forward.5} parent=1 // pred_fallthru
      _
    // Predicated region
    $region70: #{resblock_forward.5} parent=1 // pred_check
      _
    $region71: #{resblock_forward.5} parent=1 // pred_check_branch
      %61 = sbr.rel (0) target = $region73
    $region72: #{resblock_forward.5} parent=1 // pred_region
      _
    $region73: #{resblock_forward.5} parent=1 // pred_fallthru
      _
    %v63 = vld [vmem:[%s0] sm:$0xff]
    %v64 = vld [vmem:[%s0 + $0x8] sm:$0xff]
    %v65 = vld [vmem:[%s1] sm:$0xf]
    %v66 = vld [vmem:[%s1 + $0x4] sm:$0xf]
    %v67 = vld [vmem:[%s2] sm:$0xf]
    %v68 = vld [vmem:[%s2 + $0x4] sm:$0xf]
    %v69 = vld [vmem:[%s3] sm:$0xf]
    %v70 = vld [vmem:[%s3 + $0x4] sm:$0xf]
    %v71 = vld [vmem:[%s3 + $0x8] sm:$0xf]
    %v72 = vld [vmem:[%s3 + $0xc] sm:$0xf]
    %v73 = vpack.c.bf16 %v64, %v63
    %v78 = vunpack.c.l.b16 %v69
    %v79 = vunpack.c.l.b16 %v70
    %v80 = vunpack.c.l.b16 %v71
    %v81 = vunpack.c.l.b16 %v72
    %v82 = vpack.c.b16 %v79, %v78
    %v83 = vpack.c.b16 %v81, %v80
    %vm86 = vcmask 261120
    %v88 = vsel %vm86, %v73, 0
    %90 = vmatpush.bf16.msra.mxu0 0
    %91 = vmatpush.bf16.msra.mxu0 0
    %92 = vmatpush.bf16.msra.mxu0 0
    %93 = vmatpush.bf16.msra.mxu0 0
    %94 = vmatpush.bf16.msra.mxu0 0
    %95 = vmatpush.bf16.msra.mxu0 0
    %96 = vmatpush.bf16.msra.mxu0 %v83
    %97 = vmatpush.bf16.msra.mxu0 %v82
    %98 = vmatmul.bf16.gmra.mxu0 %v88
    %v99 = vpop.f32.mrf.mxu0
    %v100 = vadd.f32 0.0, %v99
    %v101 = vpop.f32.mrf.mxu0
    %v102 = vadd.f32 0.0, %v101
    %103 = vdwg.mxu0
    %v104 = vld [vmem:[%s4] sm:$0x1]
    %v105 = vld [vmem:[%s5] sm:$0x1]
    %v107 = vperm.slane %v104, 0
    %v109 = vmul.f32 %v100, %v107
    %v110 = vmul.f32 %v102, %v107
    %v112 = vperm.slane %v105, 0
    %v114 = vadd.f32 %v109, %v112
    %v115 = vadd.f32 %v110, %v112
    %vm116 = vcmp.gt.f32.partialorder %v114, 0.0
    %vm117 = vcmp.gt.f32.partialorder %v115, 0.0
    %v118 = vmin.f32 %v114, 0.0
    %v119 = vmin.f32 %v115, 0.0
    %v120 = vmul.f32 %v118, 1.442695
    %v121 = vpow.pop %v120
    %v122 = vmul.f32 %v119, 1.442695
    %v123 = vpow.pop %v122
    %v124 = vsub.f32 %v121, 1.0
    %v125 = vsub.f32 %v123, 1.0
    %v126 = vsel %vm116, %v114, %v124
    %v127 = vsel %vm117, %v115, %v125
    %v128 = vld [vmem:[%s6] sm:$0xf]
    %v129 = vld [vmem:[%s7] sm:$0xf]
    %v132 = vunpack.c.l.b16 %v67
    %v133 = vunpack.c.l.b16 %v68
    %v134 = vpack.c.b16 %v133, %v132
    %vm135 = vcmask 64512
    %v137 = vsel %vm135, %v134, 0
    %vm139 = vcmask 1043456
    %v141 = vsel %vm139, %v129, 0
    %143 = vmatpush.bf16.msra.mxu0 0
    %144 = vmatpush.bf16.msra.mxu0 0
    %145 = vmatpush.bf16.msra.mxu0 0
    %146 = vmatpush.bf16.msra.mxu0 0
    %147 = vmatpush.bf16.msra.mxu0 0
    %148 = vmatpush.bf16.msra.mxu0 0
    %149 = vmatpush.bf16.msra.mxu0 0
    %150 = vmatpush.bf16.msra.mxu0 %v141
    %151 = vmatmul.bf16.gmra.mxu0 %v137
    %v152 = vpop.f32.mrf.mxu0
    %v153 = vadd.f32 0.0, %v152
    %v154 = vpop.f32.mrf.mxu0
    %v155 = vadd.f32 0.0, %v154
    %156 = vdwg.mxu0
    %v159 = vunpack.c.l.b16 %v65
    %v160 = vunpack.c.l.b16 %v66
    %v161 = vpack.c.b16 %v160, %v159
    %v163 = vsel %vm135, %v161, 0
    %v166 = vsel %vm139, %v128, 0
    %168 = vmatpush.bf16.msra.mxu0 0
    %169 = vmatpush.bf16.msra.mxu0 0
    %170 = vmatpush.bf16.msra.mxu0 0
    %171 = vmatpush.bf16.msra.mxu0 0
    %172 = vmatpush.bf16.msra.mxu0 0
    %173 = vmatpush.bf16.msra.mxu0 0
    %174 = vmatpush.bf16.msra.mxu0 0
    %175 = vmatpush.bf16.msra.mxu0 %v166
    %176 = vmatmul.bf16.gmra.mxu0 %v163
    %v177 = vpop.f32.mrf.mxu0
    %v178 = vadd.f32 %v153, %v177
    %v179 = vpop.f32.mrf.mxu0
    %v180 = vadd.f32 %v155, %v179
    %181 = vdwg.mxu0
    %v182 = vld [vmem:[%s8] sm:$0xf]
    %v183 = vpack.c.bf16 %v127, %v126
    %v185 = vsel %vm135, %v183, 0
    %v188 = vsel %vm139, %v182, 0
    %190 = vmatpush.bf16.msra.mxu0 0
    %191 = vmatpush.bf16.msra.mxu0 0
    %192 = vmatpush.bf16.msra.mxu0 0
    %193 = vmatpush.bf16.msra.mxu0 0
    %194 = vmatpush.bf16.msra.mxu0 0
    %195 = vmatpush.bf16.msra.mxu0 0
    %196 = vmatpush.bf16.msra.mxu0 0
    %197 = vmatpush.bf16.msra.mxu0 %v188
    %198 = vmatmul.bf16.gmra.mxu0 %v185
    %v199 = vpop.f32.mrf.mxu0
    %v200 = vadd.f32 0.0, %v199
    %v201 = vpop.f32.mrf.mxu0
    %v202 = vadd.f32 0.0, %v201
    %203 = vdwg.mxu0
    %v204 = vadd.f32 %v178, %v200
    %v205 = vadd.f32 %v180, %v202
    %v206 = vld [vmem:[%s9] sm:$0x1]
    %v207 = vld [vmem:[%s10] sm:$0x1]
    %v209 = vperm.slane %v206, 0
    %v211 = vmul.f32 %v204, %v209
    %v212 = vmul.f32 %v205, %v209
    %v214 = vperm.slane %v207, 0
    %v216 = vadd.f32 %v211, %v214
    %v217 = vadd.f32 %v212, %v214
    %vm218 = vcmp.gt.f32.partialorder %v216, 0.0
    %vm219 = vcmp.gt.f32.partialorder %v217, 0.0
    %v220 = vmin.f32 %v216, 0.0
    %v221 = vmin.f32 %v217, 0.0
    %v222 = vmul.f32 %v220, 1.442695
    %v223 = vpow.pop %v222
    %v224 = vmul.f32 %v221, 1.442695
    %v225 = vpow.pop %v224
    %v226 = vsub.f32 %v223, 1.0
    %v227 = vsub.f32 %v225, 1.0
    %v228 = vsel %vm218, %v216, %v226
    %v229 = vsel %vm219, %v217, %v227
    %v230 = vld [vmem:[%s11] sm:$0xf]
    %v231 = vld [vmem:[%s12] sm:$0xf]
    %v232 = vpack.c.bf16 %v229, %v228
    %v234 = vsel %vm135, %v232, 0
    %v237 = vsel %vm139, %v231, 0
    %239 = vmatpush.bf16.msra.mxu0 0
    %240 = vmatpush.bf16.msra.mxu0 0
    %241 = vmatpush.bf16.msra.mxu0 0
    %242 = vmatpush.bf16.msra.mxu0 0
    %243 = vmatpush.bf16.msra.mxu0 0
    %244 = vmatpush.bf16.msra.mxu0 0
    %245 = vmatpush.bf16.msra.mxu0 0
    %246 = vmatpush.bf16.msra.mxu0 %v237
    %247 = vmatmul.bf16.gmra.mxu0 %v234
    %v248 = vpop.f32.mrf.mxu0
    %v249 = vadd.f32 0.0, %v248
    %v250 = vpop.f32.mrf.mxu0
    %v251 = vadd.f32 0.0, %v250
    %252 = vdwg.mxu0
    %v254 = vsel %vm139, %v230, 0
    %256 = vmatpush.bf16.msra.mxu0 0
    %257 = vmatpush.bf16.msra.mxu0 0
    %258 = vmatpush.bf16.msra.mxu0 0
    %259 = vmatpush.bf16.msra.mxu0 0
    %260 = vmatpush.bf16.msra.mxu0 0
    %261 = vmatpush.bf16.msra.mxu0 0
    %262 = vmatpush.bf16.msra.mxu0 0
    %263 = vmatpush.bf16.msra.mxu0 %v254
    %264 = vmatmul.bf16.gmra.mxu0 %v163
    %v265 = vpop.f32.mrf.mxu0
    %v266 = vadd.f32 %v249, %v265
    %v267 = vpop.f32.mrf.mxu0
    %v268 = vadd.f32 %v251, %v267
    %269 = vdwg.mxu0
    %v270 = vld [vmem:[%s13] sm:$0x1]
    %v271 = vld [vmem:[%s14] sm:$0x1]
    %v273 = vperm.slane %v270, 0
    %v275 = vmul.f32 %v266, %v273
    %v276 = vmul.f32 %v268, %v273
    %v278 = vperm.slane %v271, 0
    %v280 = vadd.f32 %v275, %v278
    %v281 = vadd.f32 %v276, %v278
    %vm282 = vcmp.gt.f32.partialorder %v280, 0.0
    %vm283 = vcmp.gt.f32.partialorder %v281, 0.0
    %v284 = vmin.f32 %v280, 0.0
    %v285 = vmin.f32 %v281, 0.0
    %v286 = vmul.f32 %v284, 1.442695
    %v287 = vpow.pop %v286
    %v288 = vmul.f32 %v285, 1.442695
    %v289 = vpow.pop %v288
    %v290 = vsub.f32 %v287, 1.0
    %v291 = vsub.f32 %v289, 1.0
    %v292 = vsel %vm282, %v280, %v290
    %v293 = vsel %vm283, %v281, %v291
    %v294 = vpack.c.bf16 %v292, %v292
    %v295 = vpack.c.bf16 %v293, %v293
    %vm296 = vcmask 60416
    %297 = vst.msk [vmem:[%s19] sm:$0xf] %vm296, %v294
    %298 = vst.msk [vmem:[%s19 + $0x4] sm:$0xf] %vm296, %v295
    %v299 = vld [vmem:[%s15] sm:$0xf]
    %v301 = vsel %vm139, %v299, 0
    %303 = vmatpush.bf16.msra.mxu0 0
    %304 = vmatpush.bf16.msra.mxu0 0
    %305 = vmatpush.bf16.msra.mxu0 0
    %306 = vmatpush.bf16.msra.mxu0 0
    %307 = vmatpush.bf16.msra.mxu0 0
    %308 = vmatpush.bf16.msra.mxu0 0
    %309 = vmatpush.bf16.msra.mxu0 0
    %310 = vmatpush.bf16.msra.mxu0 %v301
    %311 = vmatmul.bf16.gmra.mxu0 %v234
    %v312 = vpop.f32.mrf.mxu0
    %v313 = vadd.f32 0.0, %v312
    %v314 = vpop.f32.mrf.mxu0
    %v315 = vadd.f32 0.0, %v314
    %316 = vdwg.mxu0
    %v317 = vld [vmem:[%s16] sm:$0x1]
    %v318 = vld [vmem:[%s17] sm:$0x1]
    %v320 = vperm.slane %v317, 0
    %v322 = vmul.f32 %v313, %v320
    %v323 = vmul.f32 %v315, %v320
    %v325 = vperm.slane %v318, 0
    %v327 = vadd.f32 %v322, %v325
    %v328 = vadd.f32 %v323, %v325
    %v329 = vadd.f32 %v327, %v63
    %v330 = vadd.f32 %v328, %v64
    %vm331 = vcmp.gt.f32.partialorder %v329, 0.0
    %vm332 = vcmp.gt.f32.partialorder %v330, 0.0
    %v333 = vmin.f32 %v329, 0.0
    %v334 = vmin.f32 %v330, 0.0
    %v335 = vmul.f32 %v333, 1.442695
    %v336 = vpow.pop %v335
    %v337 = vmul.f32 %v334, 1.442695
    %v338 = vpow.pop %v337
    %v339 = vsub.f32 %v336, 1.0
    %v340 = vsub.f32 %v338, 1.0
    %v341 = vsel %vm331, %v329, %v339
    %v342 = vsel %vm332, %v330, %v340
    %343 = vst.msk [vmem:[#allocation2] sm:$0xff] %vm86, %v341
    %344 = vst.msk [vmem:[#allocation2 + $0x8] sm:$0xff] %vm86, %v342
    // Predicated region
    $region74: #{resblock_forward.5} parent=1 // pred_check
      _
    $region75: #{resblock_forward.5} parent=1 // pred_check_branch
      %346 = sbr.rel (0) target = $region77
    $region76: #{resblock_forward.5} parent=1 // pred_region
      %348 = vsyncadd [#allocation3], 0
      %s349 = sshll.u32 [#allocation2], 4
      %s350 = int_to_ptr.vmem [resolvable:$true] %s349
      %s351 = sshll.u32 %s18, 4
      %s352 = int_to_ptr.hbm [resolvable:$true] %s351
      %357 = dma.vmem_to_hbm [thread:$0]  %s350, 256, %s352, [#allocation3], 128, 128, 8
    $region77: #{resblock_forward.5} parent=1 // pred_fallthru
      _
    // Predicated region
    $region78: #{resblock_forward.5} parent=1 // pred_check
      _
    $region79: #{resblock_forward.5} parent=1 // pred_check_branch
      %359 = sbr.rel (0) target = $region81
    $region80: #{resblock_forward.5} parent=1 // pred_region
      _
    $region81: #{resblock_forward.5} parent=1 // pred_fallthru
      _
    // Predicated region
    $region82: #{resblock_forward.5} parent=1 // pred_check
      _
    $region83: #{resblock_forward.5} parent=1 // pred_check_branch
      %361 = sbr.rel (0) target = $region85
    $region84: #{resblock_forward.5} parent=1 // pred_region
      %363 = dma.done [#allocation3], 256
    $region85: #{resblock_forward.5} parent=1 // pred_fallthru
      _
    // Predicated region
    $region86: #{resblock_forward.5} parent=1 // pred_check
      _
    $region87: #{resblock_forward.5} parent=1 // pred_check_branch
      %365 = sbr.rel (0) target = $region89
    $region88: #{resblock_forward.5} parent=1 // pred_region
      _
    $region89: #{resblock_forward.5} parent=1 // pred_fallthru
      _
    %366 = vsyncpa [#allocation3], 1

</llo_original>
